<compile_context>
chip_gen: v6e
topology: v6e:2x2x1
jax: 0.10.0
libtpu: 0.0.40
codegen_flags: <defaults>
</compile_context>

<pallas_src>
import jax
import jax.numpy as jnp
from jax.experimental import pallas as pl
from jax.experimental.pallas import tpu as pltpu

# ---- module-consistent sizes ------------------------------------------------
NUM_AGENTS = 2                  # args.num_agents
N_ROLLOUT = 8                   # args.n_rollout_threads
B = NUM_AGENTS * N_ROLLOUT      # flattened batch = 16 (two sublane tiles)
T = 8                           # rollout chunk folded into one kernel call
OBS_DIM = 32                    # 1-D obs space -> MLPBase
HIDDEN = 64                     # args.hidden_size
ACT_DIM = 5                     # Discrete(n=5)
OH_DIM = NUM_AGENTS * ACT_DIM   # one-hot father-action block appended to features
RECURRENT_N = 1                 # args.recurrent_N

LANES = 2 * HIDDEN              # 128: lane width of every packed slab

# ---- packed weight layout ----------------------------------------------------
# wmat: (128, 640) f32. Each weight sits in its own 128-lane-aligned column block
# (zero padded) so every in-kernel load is a static, lane-aligned slice.
W1_OFF = 0 * LANES                       # (OBS_DIM, H)  MLP layer 1
W2_OFF = 1 * LANES                       # (H, H)        MLP layer 2
WGRU_OFF = 2 * LANES                     # (2H, 4H)      fused GRU: [rz | xn | hn]
WA_OFF = 4 * LANES                       # (2H, 128)     fused ACT (padded columns)
WMAT_COLS = 5 * LANES

# vecs: (16, 128) f32, one LayerNorm / bias vector per row (zero padded).
(V_LNF_G, V_LNF_B, V_B1, V_LN1_G, V_LN1_B, V_B2, V_LN2_G, V_LN2_B,
 V_BRZ, V_BXN, V_BHN, V_LNG_G, V_LNG_B) = range(13)
VEC_ROWS = 16

# per-step input slab lanes: [0:OBS_DIM) obs, [OBS_DIM:OBS_DIM+OH_DIM) one-hot,
# lane STEP_BIAS_LANE = 1.0 (hits the ba row of the fused ACT weight), lane 127 = mask.
STEP_OH_OFF = OBS_DIM                    # 32
STEP_BIAS_LANE = OBS_DIM + OH_DIM        # 42
MASK_LANE = LANES - 1                    # 127
WA_BIAS_ROW = HIDDEN + OH_DIM            # 74 == HIDDEN + (STEP_BIAS_LANE - OBS_DIM)
NEG_INF = -1e9

# layout invariants the fused ACT dot relies on
assert STEP_BIAS_LANE < OBS_DIM + HIDDEN          # bias lane inside the ACT tail window
assert MASK_LANE >= OBS_DIM + HIDDEN              # mask lane outside the ACT tail window
assert WA_BIAS_ROW == HIDDEN + (STEP_BIAS_LANE - OBS_DIM)


def _layernorm(x, g, b, eps=1e-5):
    mu = jnp.mean(x, axis=-1, keepdims=True)
    var = jnp.mean((x - mu) ** 2, axis=-1, keepdims=True)
    return (x - mu) * jax.lax.rsqrt(var + eps) * g + b


def _r_actor_kernel(step_ref, h0_ref, wmat_ref, vec_ref, out_ref, h_sc):
    """One rollout step per grid iteration; hidden state carried in VMEM scratch."""
    H = HIDDEN
    t = pl.program_id(0)

    @pl.when(t == 0)
    def _():
        h_sc[...] = h0_ref[...]

    def vec(row, width=HIDDEN):
        return vec_ref[row:row + 1, 0:width]           # (1, width), broadcasts over B

    step = step_ref[...]                                # (B, 128) packed per-step slab
    obs = step[:, 0:OBS_DIM]

    # ---------------- MLPBase: LN -> (Linear + tanh + LN) x 2 -----------------
    x = _layernorm(obs, vec(V_LNF_G, OBS_DIM), vec(V_LNF_B, OBS_DIM))
    x = jnp.tanh(jnp.dot(x, wmat_ref[0:OBS_DIM, W1_OFF:W1_OFF + H],
                         preferred_element_type=jnp.float32) + vec(V_B1))
    x = _layernorm(x, vec(V_LN1_G), vec(V_LN1_B))
    x = jnp.tanh(jnp.dot(x, wmat_ref[0:H, W2_OFF:W2_OFF + H],
                         preferred_element_type=jnp.float32) + vec(V_B2))
    x = _layernorm(x, vec(V_LN2_G), vec(V_LN2_B))

    # ---------------- RNNLayer: masked GRU cell + output LayerNorm ------------
    mask = step[:, MASK_LANE:MASK_LANE + 1]             # (B, 1)
    h = h_sc[...] * mask                                # reset hidden where mask == 0
    xh = jnp.concatenate([x, h], axis=-1)               # (B, 2H) == (B, 128)
    # single fused K=128, N=256 contraction: [rz gates | Wxn·x | Whn·h]
    g = jnp.dot(xh, wmat_ref[:, WGRU_OFF:WGRU_OFF + 4 * H],
                preferred_element_type=jnp.float32)     # (B, 4H)
    rz = jax.nn.sigmoid(g[:, 0:2 * H] + vec(V_BRZ, 2 * H))
    r = rz[:, 0:H]
    z = rz[:, H:2 * H]
    n = jnp.tanh((g[:, 2 * H:3 * H] + vec(V_BXN)) + r * (g[:, 3 * H:4 * H] + vec(V_BHN)))
    h_new = (1.0 - z) * n + z * h                       # raw hidden returned upward
    h_sc[...] = h_new
    feat = _layernorm(h_new, vec(V_LNG_G), vec(V_LNG_B))

    # ---------------- ACTLayer: fused concat([feat, one_hot, 1]) @ Wa ---------
    # step lanes [OBS_DIM : OBS_DIM+H) already hold [one_hot | 1.0 | 0...]; padding
    # lanes hit zero rows of Wa, the 1.0 lane hits the bias row (ba / -1e9 padding).
    cat = jnp.concatenate([feat, step[:, OBS_DIM:OBS_DIM + H]], axis=-1)   # (B, 128)
    logits = jnp.dot(cat, wmat_ref[:, WA_OFF:WA_OFF + LANES],
                     preferred_element_type=jnp.float32)                   # (B, 128)
    m = jnp.max(logits, axis=-1, keepdims=True)
    # deterministic action = argmax; its log-prob is m - logsumexp = -log(sum exp(l-m))
    logp = -jnp.log(jnp.sum(jnp.exp(logits - m), axis=-1, keepdims=True))
    ids = jax.lax.broadcasted_iota(jnp.int32, logits.shape, 1)
    action = jnp.min(jnp.where(logits == m, ids, jnp.int32(LANES)),
                     axis=-1, keepdims=True).astype(jnp.float32)

    # ---------------- lane-dense packed output: [h_new | action | logp | 0] ---
    lane = jax.lax.broadcasted_iota(jnp.int32, (B, H), 1)
    tail = jnp.where(lane == 0, action, jnp.where(lane == 1, logp, 0.0))
    out_ref[...] = jnp.concatenate([h_new, tail], axis=-1)                  # (B, 128)


# ---------------- parameter construction / packing ----------------------------
def init_params(key):
    """Natural (per-layer) parameters. Weights are stored (in, out), i.e. PyTorch W.T;
    GRU gate order along the 3H axis is r, z, n (PyTorch GRUCell convention)."""
    ks = jax.random.split(key, 6)
    scale = 0.1
    return {
        "lnf_g": jnp.ones((OBS_DIM,), jnp.float32),
        "lnf_b": jnp.zeros((OBS_DIM,), jnp.float32),
        "w1": scale * jax.random.normal(ks[0], (OBS_DIM, HIDDEN), jnp.float32),
        "b1": jnp.zeros((HIDDEN,), jnp.float32),
        "ln1_g": jnp.ones((HIDDEN,), jnp.float32),
        "ln1_b": jnp.zeros((HIDDEN,), jnp.float32),
        "w2": scale * jax.random.normal(ks[1], (HIDDEN, HIDDEN), jnp.float32),
        "b2": jnp.zeros((HIDDEN,), jnp.float32),
        "ln2_g": jnp.ones((HIDDEN,), jnp.float32),
        "ln2_b": jnp.zeros((HIDDEN,), jnp.float32),
        "wx": scale * jax.random.normal(ks[2], (HIDDEN, 3 * HIDDEN), jnp.float32),
        "wh": scale * jax.random.normal(ks[3], (HIDDEN, 3 * HIDDEN), jnp.float32),
        "bx": jnp.zeros((3 * HIDDEN,), jnp.float32),
        "bh": jnp.zeros((3 * HIDDEN,), jnp.float32),
        "lng_g": jnp.ones((HIDDEN,), jnp.float32),
        "lng_b": jnp.zeros((HIDDEN,), jnp.float32),
        "wa_f": scale * jax.random.normal(ks[4], (HIDDEN, ACT_DIM), jnp.float32),
        "wa_o": scale * jax.random.normal(ks[5], (OH_DIM, ACT_DIM), jnp.float32),
        "ba": jnp.zeros((ACT_DIM,), jnp.float32),
    }


def pack_params(p):
    """Pack all 19 natural parameter tensors into two contiguous f32 slabs."""
    H = HIDDEN
    wmat = jnp.zeros((2 * H, WMAT_COLS), jnp.float32)
    wmat = wmat.at[0:OBS_DIM, W1_OFF:W1_OFF + H].set(p["w1"])
    wmat = wmat.at[0:H, W2_OFF:W2_OFF + H].set(p["w2"])
    # fused GRU weight: cols [0:2H) = r|z over [x;h]; cols [2H:3H) = Wxn (x rows only);
    # cols [3H:4H) = Whn (h rows only)  ->  one K=128, N=256 MXU contraction.
    wmat = wmat.at[0:H, WGRU_OFF:WGRU_OFF + 2 * H].set(p["wx"][:, 0:2 * H])
    wmat = wmat.at[H:2 * H, WGRU_OFF:WGRU_OFF + 2 * H].set(p["wh"][:, 0:2 * H])
    wmat = wmat.at[0:H, WGRU_OFF + 2 * H:WGRU_OFF + 3 * H].set(p["wx"][:, 2 * H:3 * H])
    wmat = wmat.at[H:2 * H, WGRU_OFF + 3 * H:WGRU_OFF + 4 * H].set(p["wh"][:, 2 * H:3 * H])
    # fused ACT weight (padded to a dense 128-column block):
    #   rows [0:H) <- wa_f, rows [H:H+OH) <- wa_o, bias row <- [ba | -1e9 padding].
    wmat = wmat.at[0:H, WA_OFF:WA_OFF + ACT_DIM].set(p["wa_f"])
    wmat = wmat.at[H:H + OH_DIM, WA_OFF:WA_OFF + ACT_DIM].set(p["wa_o"])
    wmat = wmat.at[WA_BIAS_ROW, WA_OFF:WA_OFF + ACT_DIM].set(p["ba"])
    wmat = wmat.at[WA_BIAS_ROW, WA_OFF + ACT_DIM:WA_OFF + LANES].set(NEG_INF)
    # Correctness of the fused ACT dot depends on rows (WA_BIAS_ROW, 2H) of the WA
    # column block staying zero (they are hit by the zero-padding lanes of the per-step
    # slab) and on the wrapper keeping a constant 1.0 in STEP_BIAS_LANE.
    assert bool((wmat[WA_BIAS_ROW + 1:, WA_OFF:WA_OFF + LANES] == 0.0).all())

    vecs = jnp.zeros((VEC_ROWS, LANES), jnp.float32)
    vecs = vecs.at[V_LNF_G, 0:OBS_DIM].set(p["lnf_g"])
    vecs = vecs.at[V_LNF_B, 0:OBS_DIM].set(p["lnf_b"])
    vecs = vecs.at[V_B1, 0:H].set(p["b1"])
    vecs = vecs.at[V_LN1_G, 0:H].set(p["ln1_g"])
    vecs = vecs.at[V_LN1_B, 0:H].set(p["ln1_b"])
    vecs = vecs.at[V_B2, 0:H].set(p["b2"])
    vecs = vecs.at[V_LN2_G, 0:H].set(p["ln2_g"])
    vecs = vecs.at[V_LN2_B, 0:H].set(p["ln2_b"])
    vecs = vecs.at[V_BRZ, 0:2 * H].set(p["bx"][0:2 * H] + p["bh"][0:2 * H])  # bx+bh (r,z)
    vecs = vecs.at[V_BXN, 0:H].set(p["bx"][2 * H:3 * H])
    vecs = vecs.at[V_BHN, 0:H].set(p["bh"][2 * H:3 * H])
    vecs = vecs.at[V_LNG_G, 0:H].set(p["lng_g"])
    vecs = vecs.at[V_LNG_B, 0:H].set(p["lng_b"])
    return wmat, vecs


# ---------------- wrapper ------------------------------------------------------
@jax.jit
def r_actor_forward(obs_seq, rnn_states, masks_seq, one_hot_seq, wmat, vecs):
    """obs_seq: (T, B, OBS_DIM); rnn_states: (B, RECURRENT_N, HIDDEN);
    masks_seq: (T, B, 1); one_hot_seq: (T, B, NUM_AGENTS, ACT_DIM);
    wmat/vecs: packed parameter slabs. Runs the whole T-step rollout chunk in ONE
    pallas_call, returning per-step actions / log-probs and the final hidden state."""
    h0 = rnn_states.reshape(B, HIDDEN)
    oh = one_hot_seq.reshape(T, B, OH_DIM)
    ones = jnp.ones((T, B, 1), jnp.float32)
    pad = jnp.zeros((T, B, LANES - OBS_DIM - OH_DIM - 2), jnp.float32)
    # single fused wrapper op: [obs | one_hot | 1.0 | 0... | mask]  -> (T, B, 128)
    step_in = jnp.concatenate([obs_seq, oh, ones, pad, masks_seq], axis=-1)

    out = pl.pallas_call(
        _r_actor_kernel,
        out_shape=jax.ShapeDtypeStruct((T, B, LANES), jnp.float32),
        grid=(T,),
        in_specs=[
            pl.BlockSpec((None, B, LANES), lambda t: (t, 0, 0)),        # per-step slab
            pl.BlockSpec((B, HIDDEN), lambda t: (0, 0)),                # h0 (resident)
            pl.BlockSpec((2 * HIDDEN, WMAT_COLS), lambda t: (0, 0)),    # weights (resident)
            pl.BlockSpec((VEC_ROWS, LANES), lambda t: (0, 0)),          # LN/bias (resident)
        ],
        out_specs=pl.BlockSpec((None, B, LANES), lambda t: (t, 0, 0)),
        scratch_shapes=[pltpu.VMEM((B, HIDDEN), jnp.float32)],          # hidden carry
        compiler_params=pltpu.CompilerParams(dimension_semantics=("arbitrary",)),
    )(step_in, h0, wmat, vecs)

    actions = out[:, :, HIDDEN:HIDDEN + 1].astype(jnp.int32)            # (T, B, 1)
    action_log_probs = out[:, :, HIDDEN + 1:HIDDEN + 2]                 # (T, B, 1)
    final_h = out[T - 1, :, 0:HIDDEN].reshape(B, RECURRENT_N, HIDDEN)
    return actions, action_log_probs, final_h


# ---------------- pure-JAX reference (for correctness check) ------------------
def reference_forward(p, obs_seq, rnn_states, masks_seq, one_hot_seq):
    H = HIDDEN
    h = rnn_states.reshape(B, H)

    def ln(x, g, b, eps=1e-5):
        mu = x.mean(-1, keepdims=True)
        var = ((x - mu) ** 2).mean(-1, keepdims=True)
        return (x - mu) * jax.lax.rsqrt(var + eps) * g + b

    acts, lps = [], []
    for t in range(T):
        x = ln(obs_seq[t], p["lnf_g"], p["lnf_b"])
        x = ln(jnp.tanh(x @ p["w1"] + p["b1"]), p["ln1_g"], p["ln1_b"])
        x = ln(jnp.tanh(x @ p["w2"] + p["b2"]), p["ln2_g"], p["ln2_b"])
        hm = h * masks_seq[t]
        gx = x @ p["wx"] + p["bx"]
        gh = hm @ p["wh"] + p["bh"]
        r = jax.nn.sigmoid(gx[:, 0:H] + gh[:, 0:H])
        z = jax.nn.sigmoid(gx[:, H:2 * H] + gh[:, H:2 * H])
        n = jnp.tanh(gx[:, 2 * H:] + r * gh[:, 2 * H:])
        h = (1.0 - z) * n + z * hm
        feat = ln(h, p["lng_g"], p["lng_b"])
        oh = one_hot_seq[t].reshape(B, OH_DIM)
        logits = feat @ p["wa_f"] + oh @ p["wa_o"] + p["ba"]
        a = jnp.argmax(logits, axis=-1, keepdims=True)
        lp = jnp.take_along_axis(jax.nn.log_softmax(logits, axis=-1), a, axis=-1)
        acts.append(a.astype(jnp.int32))
        lps.append(lp)
    return jnp.stack(acts), jnp.stack(lps), h.reshape(B, RECURRENT_N, H)


if __name__ == "__main__":
    key = jax.random.PRNGKey(0)
    k_obs, k_h, k_oh, k_m, k_p = jax.random.split(key, 5)

    obs_seq = jax.random.normal(k_obs, (T, B, OBS_DIM), jnp.float32)
    rnn_states = jax.random.normal(k_h, (B, RECURRENT_N, HIDDEN), jnp.float32)
    masks_seq = (jax.random.uniform(k_m, (T, B, 1)) > 0.15).astype(jnp.float32)  # some resets
    father_idx = jax.random.randint(k_oh, (T, B, NUM_AGENTS), 0, ACT_DIM)
    one_hot_seq = jax.nn.one_hot(father_idx, ACT_DIM, dtype=jnp.float32)

    params = init_params(k_p)
    wmat, vecs = pack_params(params)

    actions, action_log_probs, new_rnn_states = r_actor_forward(
        obs_seq, rnn_states, masks_seq, one_hot_seq, wmat, vecs)
    jax.block_until_ready((actions, action_log_probs, new_rnn_states))

    # shape / dtype checks
    assert actions.shape == (T, B, 1) and actions.dtype == jnp.int32
    assert action_log_probs.shape == (T, B, 1)
    assert new_rnn_states.shape == (B, RECURRENT_N, HIDDEN)

    # numerical check against a pure-JAX reference of the same module
    ref_a, ref_lp, ref_h = reference_forward(params, obs_seq, rnn_states, masks_seq, one_hot_seq)
    assert bool(jnp.all(actions == ref_a))
    assert bool(jnp.allclose(action_log_probs, ref_lp, rtol=2e-4, atol=2e-4))
    assert bool(jnp.allclose(new_rnn_states, ref_h, rtol=2e-4, atol=2e-4))

    print("KERNEL_OK")
</pallas_src>

<mosaic_0001>
module attributes {stable_mosaic.version = 11 : i64} {
  func.func @_r_actor_kernel(%arg0: i32, %arg1: memref<1x16x128xf32, #tpu.memory_space<vmem>>, %arg2: memref<16x64xf32, #tpu.memory_space<vmem>>, %arg3: memref<128x640xf32, #tpu.memory_space<vmem>>, %arg4: memref<16x128xf32, #tpu.memory_space<vmem>>, %arg5: memref<1x16x128xf32, #tpu.memory_space<vmem>>, %arg6: memref<16x64xf32, #tpu.memory_space<vmem>>) attributes {dimension_semantics = [#tpu.dimension_semantics<arbitrary>], iteration_bounds = array<i64: 8>, scalar_prefetch = 0 : i64, scratch_operands = 1 : i64, tpu.core_type = #tpu.core_type<tc>, window_params = [{transform_indices = @transform_0, window_bounds = array<i64: 1, 16, 128>}, {pipeline_mode = #tpu.pipeline_mode<synchronous>, transform_indices = @transform_1, window_bounds = array<i64: 16, 64>}, {pipeline_mode = #tpu.pipeline_mode<synchronous>, transform_indices = @transform_2, window_bounds = array<i64: 128, 640>}, {pipeline_mode = #tpu.pipeline_mode<synchronous>, transform_indices = @transform_3, window_bounds = array<i64: 16, 128>}, {transform_indices = @transform_4, window_bounds = array<i64: 1, 16, 128>}]} {
    %c0_i32 = arith.constant 0 : i32
    %0 = arith.cmpi eq, %arg0, %c0_i32 : i32
    %1 = arith.extui %0 : i1 to i32
    %c0_i32_0 = arith.constant 0 : i32
    %2 = arith.cmpi ne, %1, %c0_i32_0 : i32
    scf.if %2 {
      %c0_60 = arith.constant 0 : index
      %c0_61 = arith.constant 0 : index
      %187 = vector.load %arg2[%c0_60, %c0_61] : memref<16x64xf32, #tpu.memory_space<vmem>>, vector<16x64xf32>
      %c0_62 = arith.constant 0 : index
      %c0_63 = arith.constant 0 : index
      %188 = vector.load %arg6[%c0_62, %c0_63] : memref<16x64xf32, #tpu.memory_space<vmem>>, vector<16x64xf32>
      tpu.vector_store %arg6[%c0_62, %c0_63], %187 {strides = array<i32>} : memref<16x64xf32, #tpu.memory_space<vmem>>, vector<16x64xf32>,
    } else {
    }
    %c0 = arith.constant 0 : index
    %c0_1 = arith.constant 0 : index
    %c0_2 = arith.constant 0 : index
    %3 = vector.load %arg1[%c0, %c0_1, %c0_2] : memref<1x16x128xf32, #tpu.memory_space<vmem>>, vector<1x16x128xf32>
    %4 = vector.shape_cast %3 : vector<1x16x128xf32> to vector<16x128xf32>
    %5 = vector.extract_strided_slice %4 {offsets = [0, 0], sizes = [16, 32], strides = [1, 1]} : vector<16x128xf32> to vector<16x32xf32>
    %c0_3 = arith.constant 0 : index
    %c0_4 = arith.constant 0 : index
    %6 = vector.load %arg4[%c0_3, %c0_4] : memref<16x128xf32, #tpu.memory_space<vmem>>, vector<1x32xf32>
    %c1 = arith.constant 1 : index
    %c0_5 = arith.constant 0 : index
    %7 = vector.load %arg4[%c1, %c0_5] : memref<16x128xf32, #tpu.memory_space<vmem>>, vector<1x32xf32>
    %cst = arith.constant dense<0.000000e+00> : vector<16xf32>
    %8 = vector.multi_reduction <add>, %5, %cst [1] : vector<16x32xf32> to vector<16xf32>
    %9 = vector.shape_cast %8 : vector<16xf32> to vector<16x1xf32>
    %cst_6 = arith.constant 3.200000e+01 : f32
    %10 = vector.broadcast %cst_6 : f32 to vector<16x1xf32>
    %11 = arith.divf %9, %10 : vector<16x1xf32>
    %12 = vector.broadcast %11 : vector<16x1xf32> to vector<16x32xf32>
    %13 = arith.subf %5, %12 : vector<16x32xf32>
    %14 = arith.mulf %13, %13 : vector<16x32xf32>
    %cst_7 = arith.constant dense<0.000000e+00> : vector<16xf32>
    %15 = vector.multi_reduction <add>, %14, %cst_7 [1] : vector<16x32xf32> to vector<16xf32>
    %16 = vector.shape_cast %15 : vector<16xf32> to vector<16x1xf32>
    %cst_8 = arith.constant 3.200000e+01 : f32
    %17 = vector.broadcast %cst_8 : f32 to vector<16x1xf32>
    %18 = arith.divf %16, %17 : vector<16x1xf32>
    %19 = vector.broadcast %11 : vector<16x1xf32> to vector<16x32xf32>
    %20 = arith.subf %5, %19 : vector<16x32xf32>
    %cst_9 = arith.constant 9.99999974E-6 : f32
    %21 = vector.broadcast %cst_9 : f32 to vector<16x1xf32>
    %22 = arith.addf %18, %21 : vector<16x1xf32>
    %23 = math.rsqrt %22 : vector<16x1xf32>
    %24 = vector.broadcast %23 : vector<16x1xf32> to vector<16x32xf32>
    %25 = arith.mulf %20, %24 : vector<16x32xf32>
    %26 = vector.broadcast %6 : vector<1x32xf32> to vector<16x32xf32>
    %27 = arith.mulf %25, %26 : vector<16x32xf32>
    %28 = vector.broadcast %7 : vector<1x32xf32> to vector<16x32xf32>
    %29 = arith.addf %27, %28 : vector<16x32xf32>
    %c0_10 = arith.constant 0 : index
    %c0_11 = arith.constant 0 : index
    %30 = vector.load %arg3[%c0_10, %c0_11] : memref<128x640xf32, #tpu.memory_space<vmem>>, vector<32x64xf32>
    %cst_12 = arith.constant dense<0.000000e+00> : vector<16x64xf32>
    %31 = tpu.matmul %29, %30, %cst_12 {dimension_numbers = #tpu.dot_dimension_numbers<[1], [0], [0], [1], [0, 0, 1, 1], [], []>} : vector<16x32xf32>, vector<32x64xf32>, vector<16x64xf32> -> vector<16x64xf32>
    %c2 = arith.constant 2 : index
    %c0_13 = arith.constant 0 : index
    %32 = vector.load %arg4[%c2, %c0_13] : memref<16x128xf32, #tpu.memory_space<vmem>>, vector<1x64xf32>
    %33 = vector.broadcast %32 : vector<1x64xf32> to vector<16x64xf32>
    %34 = arith.addf %31, %33 : vector<16x64xf32>
    %35 = math.tanh %34 : vector<16x64xf32>
    %c3 = arith.constant 3 : index
    %c0_14 = arith.constant 0 : index
    %36 = vector.load %arg4[%c3, %c0_14] : memref<16x128xf32, #tpu.memory_space<vmem>>, vector<1x64xf32>
    %c4 = arith.constant 4 : index
    %c0_15 = arith.constant 0 : index
    %37 = vector.load %arg4[%c4, %c0_15] : memref<16x128xf32, #tpu.memory_space<vmem>>, vector<1x64xf32>
    %cst_16 = arith.constant dense<0.000000e+00> : vector<16xf32>
    %38 = vector.multi_reduction <add>, %35, %cst_16 [1] : vector<16x64xf32> to vector<16xf32>
    %39 = vector.shape_cast %38 : vector<16xf32> to vector<16x1xf32>
    %cst_17 = arith.constant 6.400000e+01 : f32
    %40 = vector.broadcast %cst_17 : f32 to vector<16x1xf32>
    %41 = arith.divf %39, %40 : vector<16x1xf32>
    %42 = vector.broadcast %41 : vector<16x1xf32> to vector<16x64xf32>
    %43 = arith.subf %35, %42 : vector<16x64xf32>
    %44 = arith.mulf %43, %43 : vector<16x64xf32>
    %cst_18 = arith.constant dense<0.000000e+00> : vector<16xf32>
    %45 = vector.multi_reduction <add>, %44, %cst_18 [1] : vector<16x64xf32> to vector<16xf32>
    %46 = vector.shape_cast %45 : vector<16xf32> to vector<16x1xf32>
    %cst_19 = arith.constant 6.400000e+01 : f32
    %47 = vector.broadcast %cst_19 : f32 to vector<16x1xf32>
    %48 = arith.divf %46, %47 : vector<16x1xf32>
    %49 = vector.broadcast %41 : vector<16x1xf32> to vector<16x64xf32>
    %50 = arith.subf %35, %49 : vector<16x64xf32>
    %cst_20 = arith.constant 9.99999974E-6 : f32
    %51 = vector.broadcast %cst_20 : f32 to vector<16x1xf32>
    %52 = arith.addf %48, %51 : vector<16x1xf32>
    %53 = math.rsqrt %52 : vector<16x1xf32>
    %54 = vector.broadcast %53 : vector<16x1xf32> to vector<16x64xf32>
    %55 = arith.mulf %50, %54 : vector<16x64xf32>
    %56 = vector.broadcast %36 : vector<1x64xf32> to vector<16x64xf32>
    %57 = arith.mulf %55, %56 : vector<16x64xf32>
    %58 = vector.broadcast %37 : vector<1x64xf32> to vector<16x64xf32>
    %59 = arith.addf %57, %58 : vector<16x64xf32>
    %c0_21 = arith.constant 0 : index
    %c128 = arith.constant 128 : index
    %60 = vector.load %arg3[%c0_21, %c128] : memref<128x640xf32, #tpu.memory_space<vmem>>, vector<64x64xf32>
    %cst_22 = arith.constant dense<0.000000e+00> : vector<16x64xf32>
    %61 = tpu.matmul %59, %60, %cst_22 {dimension_numbers = #tpu.dot_dimension_numbers<[1], [0], [0], [1], [0, 0, 1, 1], [], []>} : vector<16x64xf32>, vector<64x64xf32>, vector<16x64xf32> -> vector<16x64xf32>
    %c5 = arith.constant 5 : index
    %c0_23 = arith.constant 0 : index
    %62 = vector.load %arg4[%c5, %c0_23] : memref<16x128xf32, #tpu.memory_space<vmem>>, vector<1x64xf32>
    %63 = vector.broadcast %62 : vector<1x64xf32> to vector<16x64xf32>
    %64 = arith.addf %61, %63 : vector<16x64xf32>
    %65 = math.tanh %64 : vector<16x64xf32>
    %c6 = arith.constant 6 : index
    %c0_24 = arith.constant 0 : index
    %66 = vector.load %arg4[%c6, %c0_24] : memref<16x128xf32, #tpu.memory_space<vmem>>, vector<1x64xf32>
    %c7 = arith.constant 7 : index
    %c0_25 = arith.constant 0 : index
    %67 = vector.load %arg4[%c7, %c0_25] : memref<16x128xf32, #tpu.memory_space<vmem>>, vector<1x64xf32>
    %cst_26 = arith.constant dense<0.000000e+00> : vector<16xf32>
    %68 = vector.multi_reduction <add>, %65, %cst_26 [1] : vector<16x64xf32> to vector<16xf32>
    %69 = vector.shape_cast %68 : vector<16xf32> to vector<16x1xf32>
    %cst_27 = arith.constant 6.400000e+01 : f32
    %70 = vector.broadcast %cst_27 : f32 to vector<16x1xf32>
    %71 = arith.divf %69, %70 : vector<16x1xf32>
    %72 = vector.broadcast %71 : vector<16x1xf32> to vector<16x64xf32>
    %73 = arith.subf %65, %72 : vector<16x64xf32>
    %74 = arith.mulf %73, %73 : vector<16x64xf32>
    %cst_28 = arith.constant dense<0.000000e+00> : vector<16xf32>
    %75 = vector.multi_reduction <add>, %74, %cst_28 [1] : vector<16x64xf32> to vector<16xf32>
    %76 = vector.shape_cast %75 : vector<16xf32> to vector<16x1xf32>
    %cst_29 = arith.constant 6.400000e+01 : f32
    %77 = vector.broadcast %cst_29 : f32 to vector<16x1xf32>
    %78 = arith.divf %76, %77 : vector<16x1xf32>
    %79 = vector.broadcast %71 : vector<16x1xf32> to vector<16x64xf32>
    %80 = arith.subf %65, %79 : vector<16x64xf32>
    %cst_30 = arith.constant 9.99999974E-6 : f32
    %81 = vector.broadcast %cst_30 : f32 to vector<16x1xf32>
    %82 = arith.addf %78, %81 : vector<16x1xf32>
    %83 = math.rsqrt %82 : vector<16x1xf32>
    %84 = vector.broadcast %83 : vector<16x1xf32> to vector<16x64xf32>
    %85 = arith.mulf %80, %84 : vector<16x64xf32>
    %86 = vector.broadcast %66 : vector<1x64xf32> to vector<16x64xf32>
    %87 = arith.mulf %85, %86 : vector<16x64xf32>
    %88 = vector.broadcast %67 : vector<1x64xf32> to vector<16x64xf32>
    %89 = arith.addf %87, %88 : vector<16x64xf32>
    %90 = vector.extract_strided_slice %4 {offsets = [0, 127], sizes = [16, 1], strides = [1, 1]} : vector<16x128xf32> to vector<16x1xf32>
    %c0_31 = arith.constant 0 : index
    %c0_32 = arith.constant 0 : index
    %91 = vector.load %arg6[%c0_31, %c0_32] : memref<16x64xf32, #tpu.memory_space<vmem>>, vector<16x64xf32>
    %92 = vector.broadcast %90 : vector<16x1xf32> to vector<16x64xf32>
    %93 = arith.mulf %91, %92 : vector<16x64xf32>
    %94 = tpu.concatenate %89, %93 in 1 : vector<16x64xf32>, vector<16x64xf32> -> vector<16x128xf32>
    %c0_33 = arith.constant 0 : index
    %c256 = arith.constant 256 : index
    %95 = vector.load %arg3[%c0_33, %c256] : memref<128x640xf32, #tpu.memory_space<vmem>>, vector<128x256xf32>
    %cst_34 = arith.constant dense<0.000000e+00> : vector<16x256xf32>
    %96 = tpu.matmul %94, %95, %cst_34 {dimension_numbers = #tpu.dot_dimension_numbers<[1], [0], [0], [1], [0, 0, 1, 1], [], []>} : vector<16x128xf32>, vector<128x256xf32>, vector<16x256xf32> -> vector<16x256xf32>
    %97 = vector.extract_strided_slice %96 {offsets = [0, 0], sizes = [16, 128], strides = [1, 1]} : vector<16x256xf32> to vector<16x128xf32>
    %c8 = arith.constant 8 : index
    %c0_35 = arith.constant 0 : index
    %98 = vector.load %arg4[%c8, %c0_35] : memref<16x128xf32, #tpu.memory_space<vmem>>, vector<1x128xf32>
    %99 = vector.broadcast %98 : vector<1x128xf32> to vector<16x128xf32>
    %100 = arith.addf %97, %99 : vector<16x128xf32>
    %101 = arith.negf %100 : vector<16x128xf32>
    %102 = math.exp %101 : vector<16x128xf32>
    %cst_36 = arith.constant 1.000000e+00 : f32
    %103 = vector.broadcast %cst_36 : f32 to vector<16x128xf32>
    %104 = arith.addf %103, %102 : vector<16x128xf32>
    %105 = arith.divf %103, %104 : vector<16x128xf32>
    %106 = vector.extract_strided_slice %105 {offsets = [0, 0], sizes = [16, 64], strides = [1, 1]} : vector<16x128xf32> to vector<16x64xf32>
    %107 = vector.extract_strided_slice %105 {offsets = [0, 64], sizes = [16, 64], strides = [1, 1]} : vector<16x128xf32> to vector<16x64xf32>
    %108 = vector.extract_strided_slice %96 {offsets = [0, 128], sizes = [16, 64], strides = [1, 1]} : vector<16x256xf32> to vector<16x64xf32>
    %c9 = arith.constant 9 : index
    %c0_37 = arith.constant 0 : index
    %109 = vector.load %arg4[%c9, %c0_37] : memref<16x128xf32, #tpu.memory_space<vmem>>, vector<1x64xf32>
    %110 = vector.broadcast %109 : vector<1x64xf32> to vector<16x64xf32>
    %111 = arith.addf %108, %110 : vector<16x64xf32>
    %112 = vector.extract_strided_slice %96 {offsets = [0, 192], sizes = [16, 64], strides = [1, 1]} : vector<16x256xf32> to vector<16x64xf32>
    %c10 = arith.constant 10 : index
    %c0_38 = arith.constant 0 : index
    %113 = vector.load %arg4[%c10, %c0_38] : memref<16x128xf32, #tpu.memory_space<vmem>>, vector<1x64xf32>
    %114 = vector.broadcast %113 : vector<1x64xf32> to vector<16x64xf32>
    %115 = arith.addf %112, %114 : vector<16x64xf32>
    %116 = arith.mulf %106, %115 : vector<16x64xf32>
    %117 = arith.addf %111, %116 : vector<16x64xf32>
    %118 = math.tanh %117 : vector<16x64xf32>
    %cst_39 = arith.constant 1.000000e+00 : f32
    %119 = vector.broadcast %cst_39 : f32 to vector<16x64xf32>
    %120 = arith.subf %119, %107 : vector<16x64xf32>
    %121 = arith.mulf %120, %118 : vector<16x64xf32>
    %122 = arith.mulf %107, %93 : vector<16x64xf32>
    %123 = arith.addf %121, %122 : vector<16x64xf32>
    %c0_40 = arith.constant 0 : index
    %c0_41 = arith.constant 0 : index
    %124 = vector.load %arg6[%c0_40, %c0_41] : memref<16x64xf32, #tpu.memory_space<vmem>>, vector<16x64xf32>
    tpu.vector_store %arg6[%c0_40, %c0_41], %123 {strides = array<i32>} : memref<16x64xf32, #tpu.memory_space<vmem>>, vector<16x64xf32>,
    %c11 = arith.constant 11 : index
    %c0_42 = arith.constant 0 : index
    %125 = vector.load %arg4[%c11, %c0_42] : memref<16x128xf32, #tpu.memory_space<vmem>>, vector<1x64xf32>
    %c12 = arith.constant 12 : index
    %c0_43 = arith.constant 0 : index
    %126 = vector.load %arg4[%c12, %c0_43] : memref<16x128xf32, #tpu.memory_space<vmem>>, vector<1x64xf32>
    %cst_44 = arith.constant dense<0.000000e+00> : vector<16xf32>
    %127 = vector.multi_reduction <add>, %123, %cst_44 [1] : vector<16x64xf32> to vector<16xf32>
    %128 = vector.shape_cast %127 : vector<16xf32> to vector<16x1xf32>
    %cst_45 = arith.constant 6.400000e+01 : f32
    %129 = vector.broadcast %cst_45 : f32 to vector<16x1xf32>
    %130 = arith.divf %128, %129 : vector<16x1xf32>
    %131 = vector.broadcast %130 : vector<16x1xf32> to vector<16x64xf32>
    %132 = arith.subf %123, %131 : vector<16x64xf32>
    %133 = arith.mulf %132, %132 : vector<16x64xf32>
    %cst_46 = arith.constant dense<0.000000e+00> : vector<16xf32>
    %134 = vector.multi_reduction <add>, %133, %cst_46 [1] : vector<16x64xf32> to vector<16xf32>
    %135 = vector.shape_cast %134 : vector<16xf32> to vector<16x1xf32>
    %cst_47 = arith.constant 6.400000e+01 : f32
    %136 = vector.broadcast %cst_47 : f32 to vector<16x1xf32>
    %137 = arith.divf %135, %136 : vector<16x1xf32>
    %138 = vector.broadcast %130 : vector<16x1xf32> to vector<16x64xf32>
    %139 = arith.subf %123, %138 : vector<16x64xf32>
    %cst_48 = arith.constant 9.99999974E-6 : f32
    %140 = vector.broadcast %cst_48 : f32 to vector<16x1xf32>
    %141 = arith.addf %137, %140 : vector<16x1xf32>
    %142 = math.rsqrt %141 : vector<16x1xf32>
    %143 = vector.broadcast %142 : vector<16x1xf32> to vector<16x64xf32>
    %144 = arith.mulf %139, %143 : vector<16x64xf32>
    %145 = vector.broadcast %125 : vector<1x64xf32> to vector<16x64xf32>
    %146 = arith.mulf %144, %145 : vector<16x64xf32>
    %147 = vector.broadcast %126 : vector<1x64xf32> to vector<16x64xf32>
    %148 = arith.addf %146, %147 : vector<16x64xf32>
    %149 = vector.extract_strided_slice %4 {offsets = [0, 32], sizes = [16, 64], strides = [1, 1]} : vector<16x128xf32> to vector<16x64xf32>
    %150 = tpu.concatenate %148, %149 in 1 : vector<16x64xf32>, vector<16x64xf32> -> vector<16x128xf32>
    %c0_49 = arith.constant 0 : index
    %c512 = arith.constant 512 : index
    %151 = vector.load %arg3[%c0_49, %c512] : memref<128x640xf32, #tpu.memory_space<vmem>>, vector<128x128xf32>
    %cst_50 = arith.constant dense<0.000000e+00> : vector<16x128xf32>
    %152 = tpu.matmul %150, %151, %cst_50 {dimension_numbers = #tpu.dot_dimension_numbers<[1], [0], [0], [1], [0, 0, 1, 1], [], []>} : vector<16x128xf32>, vector<128x128xf32>, vector<16x128xf32> -> vector<16x128xf32>
    %cst_51 = arith.constant dense<0xFF800000> : vector<16xf32>
    %153 = vector.multi_reduction <maximumf>, %152, %cst_51 [1] : vector<16x128xf32> to vector<16xf32>
    %154 = vector.shape_cast %153 : vector<16xf32> to vector<16x1xf32>
    %155 = vector.broadcast %154 : vector<16x1xf32> to vector<16x128xf32>
    %156 = arith.subf %152, %155 : vector<16x128xf32>
    %157 = math.exp %156 : vector<16x128xf32>
    %cst_52 = arith.constant dense<0.000000e+00> : vector<16xf32>
    %158 = vector.multi_reduction <add>, %157, %cst_52 [1] : vector<16x128xf32> to vector<16xf32>
    %159 = vector.shape_cast %158 : vector<16xf32> to vector<16x1xf32>
    %160 = math.log %159 : vector<16x1xf32>
    %cst_53 = arith.constant 0.000000e+00 : f32
    %161 = vector.broadcast %cst_53 : f32 to vector<16x1xf32>
    %162 = arith.subf %161, %160 : vector<16x1xf32>
    %163 = tpu.iota {dimensions = array<i32: 1>} : vector<16x128xi32>
    %164 = vector.broadcast %154 : vector<16x1xf32> to vector<16x128xf32>
    %165 = arith.cmpf oeq, %152, %164 : vector<16x128xf32>
    %c128_i32 = arith.constant 128 : i32
    %166 = vector.broadcast %c128_i32 : i32 to vector<16x128xi32>
    %167 = arith.select %165, %163, %166 : vector<16x128xi1>, vector<16x128xi32>
    %cst_54 = arith.constant dense<2147483647> : vector<16xi32>
    %168 = vector.multi_reduction <minsi>, %167, %cst_54 [1] : vector<16x128xi32> to vector<16xi32>
    %169 = vector.shape_cast %168 : vector<16xi32> to vector<16x1xi32>
    %170 = arith.sitofp %169 : vector<16x1xi32> to vector<16x1xf32>
    %171 = tpu.iota {dimensions = array<i32: 1>} : vector<16x64xi32>
    %c0_i32_55 = arith.constant 0 : i32
    %172 = vector.broadcast %c0_i32_55 : i32 to vector<16x64xi32>
    %173 = arith.cmpi eq, %171, %172 : vector<16x64xi32>
    %c1_i32 = arith.constant 1 : i32
    %174 = vector.broadcast %c1_i32 : i32 to vector<16x64xi32>
    %175 = arith.cmpi eq, %171, %174 : vector<16x64xi32>
    %cst_56 = arith.constant 0.000000e+00 : f32
    %176 = vector.shape_cast %162 : vector<16x1xf32> to vector<16x1xf32>
    %177 = vector.broadcast %176 : vector<16x1xf32> to vector<16x64xf32>
    %178 = vector.broadcast %cst_56 : f32 to vector<16x64xf32>
    %179 = arith.select %175, %177, %178 : vector<16x64xi1>, vector<16x64xf32>
    %180 = vector.shape_cast %170 : vector<16x1xf32> to vector<16x1xf32>
    %181 = vector.broadcast %180 : vector<16x1xf32> to vector<16x64xf32>
    %182 = arith.select %173, %181, %179 : vector<16x64xi1>, vector<16x64xf32>
    %183 = tpu.concatenate %123, %182 in 1 : vector<16x64xf32>, vector<16x64xf32> -> vector<16x128xf32>
    %c0_57 = arith.constant 0 : index
    %c0_58 = arith.constant 0 : index
    %c0_59 = arith.constant 0 : index
    %184 = vector.load %arg5[%c0_57, %c0_58, %c0_59] : memref<1x16x128xf32, #tpu.memory_space<vmem>>, vector<1x16x128xf32>
    %185 = vector.shape_cast %184 : vector<1x16x128xf32> to vector<16x128xf32>
    %186 = vector.shape_cast %183 : vector<16x128xf32> to vector<1x16x128xf32>
    tpu.vector_store %arg5[%c0_57, %c0_58, %c0_59], %186 {strides = array<i32>} : memref<1x16x128xf32, #tpu.memory_space<vmem>>, vector<1x16x128xf32>,
    return
  }
  func.func @transform_0(%arg0: i32) -> (i32, i32, i32) {
    %c0_i32 = arith.constant 0 : i32
    %c0_i32_0 = arith.constant 0 : i32
    %c0_i32_1 = arith.constant 0 : i32
    return %arg0, %c0_i32, %c0_i32_0 : i32, i32, i32
  }
  func.func @transform_1(%arg0: i32) -> (i32, i32) {
    %c0_i32 = arith.constant 0 : i32
    %c0_i32_0 = arith.constant 0 : i32
    %c0_i32_1 = arith.constant 0 : i32
    return %c0_i32, %c0_i32_0 : i32, i32
  }
  func.func @transform_2(%arg0: i32) -> (i32, i32) {
    %c0_i32 = arith.constant 0 : i32
    %c0_i32_0 = arith.constant 0 : i32
    %c0_i32_1 = arith.constant 0 : i32
    return %c0_i32, %c0_i32_0 : i32, i32
  }
  func.func @transform_3(%arg0: i32) -> (i32, i32) {
    %c0_i32 = arith.constant 0 : i32
    %c0_i32_0 = arith.constant 0 : i32
    %c0_i32_1 = arith.constant 0 : i32
    return %c0_i32, %c0_i32_0 : i32, i32
  }
  func.func @transform_4(%arg0: i32) -> (i32, i32, i32) {
    %c0_i32 = arith.constant 0 : i32
    %c0_i32_0 = arith.constant 0 : i32
    %c0_i32_1 = arith.constant 0 : i32
    return %arg0, %c0_i32, %c0_i32_0 : i32, i32, i32
  }
}

</mosaic_0001>

<llo_original>
// kernel: r_actor_forward.1
$region0: #{r_actor_forward.1}
  #allocation0 [shape = 'u32[]', space=smem, size = 0x4, offset = 0x4, fixed_abs, tag = 'smem constant byte address 0x4 - core index']
  #allocation1 [shape = 'u32[144,128]{1,0:T(1,128)}', space=vmem, size = 0x12000, scoped, tag = 'internal scratch']
  #allocation2 [shape = 'f32[16,64]{1,0:T(8,128)}', space=vmem, size = 0x2000, scoped, tag = 'scratch operand']
  %s0 = inlined_call_operand.vmem [shape: f32[8,16,128], index: 0, kind: input, shape index: {}]
  %s1 = inlined_call_operand.vmem [shape: f32[16,64], index: 1, kind: input, shape index: {}]
  %s2 = inlined_call_operand.vmem [shape: f32[128,640], index: 2, kind: input, shape index: {}]
  %s3 = inlined_call_operand.vmem [shape: f32[16,128], index: 3, kind: input, shape index: {}]
  %s4 = inlined_call_operand.vmem [shape: f32[8,16,128], index: 4, kind: output, shape index: {}]
  %s5 = sld [smem:[#allocation0]]
  $region53: #{r_actor_forward.1} parent=0
    _
  %s7 = ssub.s32 1, %s5
  %s8 = scalar_select 0, %s7, %s5
  loop: start=0, step=1, limit=10
  $region2: #{r_actor_forward.1} parent=0 // loop_pre_header
    _
  $region3: #{r_actor_forward.1} parent=0 // loop_header
    %s10 = sphi 0, %s14
    %p11 = scmp.ge.s32.totalorder %s10, 10
    %s20 = sphi 0, %s22
    %s23 = sphi 0, %s20
    %s24 = sphi 0, %s23
    %s40 = sphi 0, %s24
    %s44 = sphi 0, %s44
    %s46 = sphi 0, %s44
    %s47 = sphi 0, %s46
    %s61 = sphi 0, %s47
    %s65 = sphi 0, %s65
    %s67 = sphi 0, %s65
    %s68 = sphi 0, %s67
    %s82 = sphi 0, %s68
    %s86 = sphi 0, %s86
    %s88 = sphi 0, %s86
    %s89 = sphi 0, %s88
    %s103 = sphi 0, %s89
    %s109 = sphi 0, %s111
    %s112 = sphi 0, %s109
    %s113 = sphi 0, %s112
    %s129 = sphi 0, %s113
  $region4: #{r_actor_forward.1} parent=0 // loop_header_branch
    %13 = sbr.rel (%p11) target = $region8
  $region5: #{r_actor_forward.1} parent=0 // loop_body
    %s15 = ssub.s32 %s10, 1
    %s16 = ssub.s32 %s10, 2
    %s17 = sadd.s32 %s10, 1
    %s18 = ssub.s32 %s10, %s17
    %p19 = scmp.eq.s32.totalorder %s18, 0
    %s21 = sadd.s32 %s20, 1
    %s22 = scalar_select %p19, %s20, %s21
    %p25 = pneg %p19
    %p26 = scmp.eq.s32.totalorder %s10, 7
    %p27 = por %p25, %p26
    %p28 = scmp.ne.s32.totalorder %s20, %s23
    %p29 = scmp.eq.s32.totalorder %s10, 0
    %p30 = por %p28, %p29
    %p31 = scmp.ne.s32.totalorder %s20, %s23
    %p32 = scmp.eq.s32.totalorder %s15, 7
    %p33 = por %p31, %p32
    %p34 = scmp.ne.s32.totalorder %s23, %s24
    %p35 = scmp.eq.s32.totalorder %s15, 0
    %p36 = por %p34, %p35
    %p37 = scmp.ne.s32.totalorder %s23, %s24
    %p38 = scmp.eq.s32.totalorder %s16, 7
    %p39 = por %p37, %p38
    %p41 = scmp.ne.s32.totalorder %s24, %s40
    %p42 = scmp.eq.s32.totalorder %s16, 0
    %p43 = por %p41, %p42
    %s45 = sadd.s32 %s44, 1
    %p48 = scmp.eq.s32.totalorder %s10, 7
    %p49 = scmp.ne.s32.totalorder %s44, %s46
    %p50 = scmp.eq.s32.totalorder %s10, 0
    %p51 = por %p49, %p50
    %p52 = scmp.ne.s32.totalorder %s44, %s46
    %p53 = scmp.eq.s32.totalorder %s15, 7
    %p54 = por %p52, %p53
    %p55 = scmp.ne.s32.totalorder %s46, %s47
    %p56 = scmp.eq.s32.totalorder %s15, 0
    %p57 = por %p55, %p56
    %p58 = scmp.ne.s32.totalorder %s46, %s47
    %p59 = scmp.eq.s32.totalorder %s16, 7
    %p60 = por %p58, %p59
    %p62 = scmp.ne.s32.totalorder %s47, %s61
    %p63 = scmp.eq.s32.totalorder %s16, 0
    %p64 = por %p62, %p63
    %s66 = sadd.s32 %s65, 1
    %p69 = scmp.eq.s32.totalorder %s10, 7
    %p70 = scmp.ne.s32.totalorder %s65, %s67
    %p71 = scmp.eq.s32.totalorder %s10, 0
    %p72 = por %p70, %p71
    %p73 = scmp.ne.s32.totalorder %s65, %s67
    %p74 = scmp.eq.s32.totalorder %s15, 7
    %p75 = por %p73, %p74
    %p76 = scmp.ne.s32.totalorder %s67, %s68
    %p77 = scmp.eq.s32.totalorder %s15, 0
    %p78 = por %p76, %p77
    %p79 = scmp.ne.s32.totalorder %s67, %s68
    %p80 = scmp.eq.s32.totalorder %s16, 7
    %p81 = por %p79, %p80
    %p83 = scmp.ne.s32.totalorder %s68, %s82
    %p84 = scmp.eq.s32.totalorder %s16, 0
    %p85 = por %p83, %p84
    %s87 = sadd.s32 %s86, 1
    %p90 = scmp.eq.s32.totalorder %s10, 7
    %p91 = scmp.ne.s32.totalorder %s86, %s88
    %p92 = scmp.eq.s32.totalorder %s10, 0
    %p93 = por %p91, %p92
    %p94 = scmp.ne.s32.totalorder %s86, %s88
    %p95 = scmp.eq.s32.totalorder %s15, 7
    %p96 = por %p94, %p95
    %p97 = scmp.ne.s32.totalorder %s88, %s89
    %p98 = scmp.eq.s32.totalorder %s15, 0
    %p99 = por %p97, %p98
    %p100 = scmp.ne.s32.totalorder %s88, %s89
    %p101 = scmp.eq.s32.totalorder %s16, 7
    %p102 = por %p100, %p101
    %p104 = scmp.ne.s32.totalorder %s89, %s103
    %p105 = scmp.eq.s32.totalorder %s16, 0
    %p106 = por %p104, %p105
    %s107 = ssub.s32 %s10, %s17
    %p108 = scmp.eq.s32.totalorder %s107, 0
    %s110 = sadd.s32 %s109, 1
    %s111 = scalar_select %p108, %s109, %s110
    %p114 = pneg %p108
    %p115 = scmp.eq.s32.totalorder %s10, 7
    %p116 = por %p114, %p115
    %p117 = scmp.ne.s32.totalorder %s109, %s112
    %p118 = scmp.eq.s32.totalorder %s10, 0
    %p119 = por %p117, %p118
    %p120 = scmp.ne.s32.totalorder %s109, %s112
    %p121 = scmp.eq.s32.totalorder %s15, 7
    %p122 = por %p120, %p121
    %p123 = scmp.ne.s32.totalorder %s112, %s113
    %p124 = scmp.eq.s32.totalorder %s15, 0
    %p125 = por %p123, %p124
    %p126 = scmp.ne.s32.totalorder %s112, %s113
    %p127 = scmp.eq.s32.totalorder %s16, 7
    %p128 = por %p126, %p127
    %p130 = scmp.ne.s32.totalorder %s113, %s129
    %p131 = scmp.eq.s32.totalorder %s16, 0
    %p132 = por %p130, %p131
    %p133 = scmp.le.s32.totalorder 1, %s10
    %p134 = scmp.lt.s32.totalorder %s10, 9
    %p135 = pnand %p133, %p134
    %p136 = pneg %p135
    // Predicated region
    $region9: #{r_actor_forward.1} parent=5 // pred_check
      _
    $region10: #{r_actor_forward.1} parent=5 // pred_check_branch
      %138 = sbr.rel (%p135) target = $region12
    $region11: #{r_actor_forward.1} parent=5 // pred_region
      %s139 = ssub.s32 %s10, 1
      // Predicated region
      $region13: #{r_actor_forward.1} parent=11 // pred_check
        %p140 = pneg %p57
      $region14: #{r_actor_forward.1} parent=11 // pred_check_branch
        %142 = sbr.rel (%p140) target = $region16
      $region15: #{r_actor_forward.1} parent=11 // pred_region
        _
      $region16: #{r_actor_forward.1} parent=11 // pred_fallthru
        _
      // Predicated region
      $region17: #{r_actor_forward.1} parent=11 // pred_check
        %p143 = pneg %p78
      $region18: #{r_actor_forward.1} parent=11 // pred_check_branch
        %145 = sbr.rel (%p143) target = $region20
      $region19: #{r_actor_forward.1} parent=11 // pred_region
        _
      $region20: #{r_actor_forward.1} parent=11 // pred_fallthru
        _
      // Predicated region
      $region21: #{r_actor_forward.1} parent=11 // pred_check
        %p146 = pneg %p99
      $region22: #{r_actor_forward.1} parent=11 // pred_check_branch
        %148 = sbr.rel (%p146) target = $region24
      $region23: #{r_actor_forward.1} parent=11 // pred_region
        _
      $region24: #{r_actor_forward.1} parent=11 // pred_fallthru
        _
    $region12: #{r_actor_forward.1} parent=5 // pred_fallthru
      _
    %p149 = scmp.lt.s32.totalorder %s10, 8
    // Predicated region
    $region25: #{r_actor_forward.1} parent=5 // pred_check
      %p150 = pneg %p149
    $region26: #{r_actor_forward.1} parent=5 // pred_check_branch
      %152 = sbr.rel (%p150) target = $region28
    $region27: #{r_actor_forward.1} parent=5 // pred_region
      // Predicated region
      $region29: #{r_actor_forward.1} parent=27 // pred_check
        %p153 = pneg %p30
      $region30: #{r_actor_forward.1} parent=27 // pred_check_branch
        %155 = sbr.rel (%p153) target = $region32
      $region31: #{r_actor_forward.1} parent=27 // pred_region
        %p156 = scmp.lt.s32.totalorder %s10, 7
        %s157 = scalar_select %p156, %s10, 7
        %s158 = smul.addr %s157, 2
        %s159 = smul.addr %s158, 8
        %s160 = scalar_lea.vmem %s0, %s159
      $region32: #{r_actor_forward.1} parent=27 // pred_fallthru
        _
    $region28: #{r_actor_forward.1} parent=5 // pred_fallthru
      _
    %p161 = scmp.le.s32.totalorder 1, %s10
    %p162 = scmp.lt.s32.totalorder %s10, 9
    %p163 = pnand %p161, %p162
    %p164 = pneg %p163
    // Predicated region
    $region33: #{r_actor_forward.1} parent=5 // pred_check
      _
    $region34: #{r_actor_forward.1} parent=5 // pred_check_branch
      %166 = sbr.rel (%p163) target = $region36
    $region35: #{r_actor_forward.1} parent=5 // pred_region
      %s167 = ssub.s32 %s10, 1
      %p168 = scmp.lt.s32.totalorder %s15, 7
      %s169 = scalar_select %p168, %s15, 7
      %s170 = smul.addr %s169, 2
      %s171 = smul.addr %s170, 8
      %s172 = scalar_lea.vmem %s0, %s171
      %p173 = pneg %p36
      %p174 = pneg %p33
      %p175 = pneg %p57
      %p176 = pneg %p54
      %p177 = pneg %p78
      %p178 = pneg %p75
      %p179 = pneg %p99
      %p180 = pneg %p96
      %p181 = pneg %p125
      %p182 = pneg %p122
      %p183 = scmp.lt.s32.totalorder %s15, 7
      %s184 = scalar_select %p183, %s15, 7
      %s185 = smul.addr %s184, 2
      %s186 = smul.addr %s185, 8
      %s187 = scalar_lea.vmem %s4, %s186
      %p188 = scmp.lt.s32.totalorder %s15, 7
      %s189 = scalar_select %p188, %s15, 7
      %s190 = smul.addr %s189, 2
      %s191 = smul.addr %s190, 8
      %s192 = scalar_lea.vmem %s0, %s191
      %p193 = scmp.lt.s32.totalorder %s15, 7
      %s194 = scalar_select %p193, %s15, 7
      %s195 = smul.addr %s194, 2
      %s196 = smul.addr %s195, 8
      %s197 = scalar_lea.vmem %s4, %s196
      %p198 = scmp.eq.s32.totalorder %s15, 0
      // Predicated region
      $region37: #{r_actor_forward.1} parent=35 // pred_check
        %p199 = pneg %p198
      $region38: #{r_actor_forward.1} parent=35 // pred_check_branch
        %201 = sbr.rel (%p199) target = $region40
      $region39: #{r_actor_forward.1} parent=35 // pred_region
        %v202 = vld [vmem:[%s1] sm:$0xff]
        %v203 = vld [vmem:[%s1 + $0x8] sm:$0xff]
        %vm204 = vcmask 523264
        %205 = vst.msk [vmem:[#allocation2] sm:$0xff] %vm204, %v202
        %206 = vst.msk [vmem:[#allocation2 + $0x8] sm:$0xff] %vm204, %v203
      $region40: #{r_actor_forward.1} parent=35 // pred_fallthru
        _
      %v207 = vld [vmem:[%s192] sm:$0xff]
      %v208 = vld [vmem:[%s192 + $0x8] sm:$0xff]
      %v209 = vld [vmem:[%s3] sm:$0x1]
      %v210 = vld [vmem:[%s3 + $0x1] sm:$0x1]
      %vm211 = vcmask 261120
      %v212 = vsel %vm211, %v207, 0.0
      %213 = vadd.xlane.f32.xlu0 %v212
      %v214 = vpop.xlane.xlu0 %213
      %v215 = vsel %vm211, %v208, 0.0
      %216 = vadd.xlane.f32.xlu0 %v215
      %v217 = vpop.xlane.xlu0 %216
      %v218 = vrcp.pop 32.0
      %v219 = vmul.f32 %v214, %v218
      %v220 = vmul.f32 %v217, %v218
      %v221 = vsub.f32 %v207, %v219
      %v222 = vsub.f32 %v208, %v220
      %v223 = vmul.f32 %v221, %v221
      %v224 = vmul.f32 %v222, %v222
      %v225 = vsel %vm211, %v223, 0.0
      %226 = vadd.xlane.f32.xlu0 %v225
      %v227 = vpop.xlane.xlu0 %226
      %v228 = vsel %vm211, %v224, 0.0
      %229 = vadd.xlane.f32.xlu0 %v228
      %v230 = vpop.xlane.xlu0 %229
      %v231 = vmul.f32 %v227, %v218
      %v232 = vmul.f32 %v230, %v218
      %v233 = vadd.f32 %v231, 1e-05
      %v234 = vadd.f32 %v232, 1e-05
      %v235 = vrsqrt.pop %v233
      %v236 = vrsqrt.pop %v234
      %v237 = vmul.f32 %v221, %v235
      %v238 = vmul.f32 %v222, %v236
      %v239 = vlaneseq
      %v240 = vshrl.u32 %v239, 7
      %v241 = vsub.s32 0, %v240
      %v242 = vrot.slane %v209, %v241
      %v243 = vmul.f32 %v237, %v242
      %v244 = vmul.f32 %v238, %v242
      %v245 = vlaneseq
      %v246 = vshrl.u32 %v245, 7
      %v247 = vsub.s32 0, %v246
      %v248 = vrot.slane %v210, %v247
      %v249 = vadd.f32 %v243, %v248
      %v250 = vadd.f32 %v244, %v248
      %v251 = vld [vmem:[%s2] sm:$0xff]
      %v252 = vld [vmem:[%s2 + $0x28] sm:$0xff]
      %v253 = vld [vmem:[%s2 + $0x50] sm:$0xff]
      %v254 = vld [vmem:[%s2 + $0x78] sm:$0xff]
      %v255 = vld [vmem:[%s3 + $0x2] sm:$0x1]
      %v256 = vlaneseq
      %v257 = vshrl.u32 %v256, 7
      %v258 = vsub.s32 0, %v257
      %v259 = vrot.slane %v255, %v258
      %v261 = vsel %vm211, %v249, 0
      %v264 = vsel %vm211, %v250, 0
      %266 = vmatprep.subr.mxu0 0.0
      %267 = vmatpush1.msra.mxu0 0.0
      %268 = vmatprep.subr.mxu0 0.0
      %269 = vmatpush1.msra.mxu0 0.0
      %270 = vmatprep.subr.mxu0 0.0
      %271 = vmatpush1.msra.mxu0 0.0
      %272 = vmatprep.subr.mxu0 0.0
      %273 = vmatpush1.msra.mxu0 0.0
      %274 = vmatprep.subr.mxu0 0.0
      %275 = vmatpush1.msra.mxu0 0.0
      %276 = vmatprep.subr.mxu0 0.0
      %277 = vmatpush1.msra.mxu0 0.0
      %278 = vmatprep.subr.mxu0 0.0
      %279 = vmatpush1.msra.mxu0 0.0
      %280 = vmatprep.subr.mxu0 0.0
      %281 = vmatpush1.msra.mxu0 0.0
      %282 = vmatprep.subr.mxu0 0.0
      %283 = vmatpush1.msra.mxu0 0.0
      %284 = vmatprep.subr.mxu0 0.0
      %285 = vmatpush1.msra.mxu0 0.0
      %286 = vmatprep.subr.mxu0 0.0
      %287 = vmatpush1.msra.mxu0 0.0
      %288 = vmatprep.subr.mxu0 0.0
      %289 = vmatpush1.msra.mxu0 0.0
      %290 = vmatprep.subr.mxu0 0.0
      %291 = vmatpush1.msra.mxu0 %v254
      %292 = vmatprep.subr.mxu0 0.0
      %293 = vmatpush1.msra.mxu0 %v253
      %294 = vmatprep.subr.mxu0 0.0
      %295 = vmatpush1.msra.mxu0 %v252
      %296 = vmatprep.subr.mxu0 0.0
      %297 = vmatpush1.msra.mxu0 %v251
      %298 = vmatprep.subr.mxu0 0.0
      %299 = vmatpush2.msra.mxu0 0.0
      %300 = vmatprep.subr.mxu0 0.0
      %301 = vmatpush2.msra.mxu0 0.0
      %302 = vmatprep.subr.mxu0 0.0
      %303 = vmatpush2.msra.mxu0 0.0
      %304 = vmatprep.subr.mxu0 0.0
      %305 = vmatpush2.msra.mxu0 0.0
      %306 = vmatprep.subr.mxu0 0.0
      %307 = vmatpush2.msra.mxu0 0.0
      %308 = vmatprep.subr.mxu0 0.0
      %309 = vmatpush2.msra.mxu0 0.0
      %310 = vmatprep.subr.mxu0 0.0
      %311 = vmatpush2.msra.mxu0 0.0
      %312 = vmatprep.subr.mxu0 0.0
      %313 = vmatpush2.msra.mxu0 0.0
      %314 = vmatprep.subr.mxu0 0.0
      %315 = vmatpush2.msra.mxu0 0.0
      %316 = vmatprep.subr.mxu0 0.0
      %317 = vmatpush2.msra.mxu0 0.0
      %318 = vmatprep.subr.mxu0 0.0
      %319 = vmatpush2.msra.mxu0 0.0
      %320 = vmatprep.subr.mxu0 0.0
      %321 = vmatpush2.msra.mxu0 0.0
      %322 = vmatprep.subr.mxu0 0.0
      %323 = vmatpush2.msra.mxu0 0.0
      %324 = vmatprep.subr.mxu0 0.0
      %325 = vmatpush2.msra.mxu0 0.0
      %326 = vmatprep.subr.mxu0 0.0
      %327 = vmatpush2.msra.mxu0 0.0
      %328 = vmatprep.subr.mxu0 0.0
      %329 = vmatpush2.msra.mxu0 0.0
      %330 = vmatprep.mubr.f32.mxu0 0.0
      %331 = vmatmul.mubr.f32.gmra.mxu0 %v261
      %v332 = vpop.f32.mrf.mxu0
      %v333 = vadd.f32 %v259, %v332
      %v334 = vpop.f32.mrf.mxu0
      %335 = vmatprep.mubr.f32.mxu0 0.0
      %336 = vmatmul.mubr.f32.gmra.mxu0 %v264
      %v337 = vpop.f32.mrf.mxu0
      %v338 = vadd.f32 %v259, %v337
      %v339 = vpop.f32.mrf.mxu0
      %340 = vdwg.mxu0
      %v341 = vtanh.pop %v333
      %v342 = vtanh.pop %v338
      %v343 = vld [vmem:[%s3 + $0x3] sm:$0x1]
      %v344 = vld [vmem:[%s3 + $0x4] sm:$0x1]
      %vm345 = vcmask 523264
      %v346 = vsel %vm345, %v341, 0.0
      %347 = vadd.xlane.f32.xlu0 %v346
      %v348 = vpop.xlane.xlu0 %347
      %v349 = vsel %vm345, %v342, 0.0
      %350 = vadd.xlane.f32.xlu0 %v349
      %v351 = vpop.xlane.xlu0 %350
      %v352 = vrcp.pop 64.0
      %v353 = vmul.f32 %v348, %v352
      %v354 = vmul.f32 %v351, %v352
      %v355 = vsub.f32 %v341, %v353
      %v356 = vsub.f32 %v342, %v354
      %v357 = vmul.f32 %v355, %v355
      %v358 = vmul.f32 %v356, %v356
      %v359 = vsel %vm345, %v357, 0.0
      %360 = vadd.xlane.f32.xlu0 %v359
      %v361 = vpop.xlane.xlu0 %360
      %v362 = vsel %vm345, %v358, 0.0
      %363 = vadd.xlane.f32.xlu0 %v362
      %v364 = vpop.xlane.xlu0 %363
      %v365 = vmul.f32 %v361, %v352
      %v366 = vmul.f32 %v364, %v352
      %v367 = vadd.f32 %v365, 1e-05
      %v368 = vadd.f32 %v366, 1e-05
      %v369 = vrsqrt.pop %v367
      %v370 = vrsqrt.pop %v368
      %v371 = vmul.f32 %v355, %v369
      %v372 = vmul.f32 %v356, %v370
      %v373 = vlaneseq
      %v374 = vshrl.u32 %v373, 7
      %v375 = vsub.s32 0, %v374
      %v376 = vrot.slane %v343, %v375
      %v377 = vmul.f32 %v371, %v376
      %v378 = vmul.f32 %v372, %v376
      %v379 = vlaneseq
      %v380 = vshrl.u32 %v379, 7
      %v381 = vsub.s32 0, %v380
      %v382 = vrot.slane %v344, %v381
      %v383 = vadd.f32 %v377, %v382
      %v384 = vadd.f32 %v378, %v382
      %v385 = vld [vmem:[%s2 + $0x8] sm:$0xff]
      %v386 = vld [vmem:[%s2 + $0x30] sm:$0xff]
      %v387 = vld [vmem:[%s2 + $0x58] sm:$0xff]
      %v388 = vld [vmem:[%s2 + $0x80] sm:$0xff]
      %v389 = vld [vmem:[%s2 + $0xa8] sm:$0xff]
      %v390 = vld [vmem:[%s2 + $0xd0] sm:$0xff]
      %v391 = vld [vmem:[%s2 + $0xf8] sm:$0xff]
      %v392 = vld [vmem:[%s2 + $0x120] sm:$0xff]
      %v393 = vld [vmem:[%s3 + $0x5] sm:$0x1]
      %v394 = vlaneseq
      %v395 = vshrl.u32 %v394, 7
      %v396 = vsub.s32 0, %v395
      %v397 = vrot.slane %v393, %v396
      %v399 = vsel %vm345, %v383, 0
      %v402 = vsel %vm345, %v384, 0
      %404 = vmatprep.subr.mxu0 0.0
      %405 = vmatpush1.msra.mxu0 0.0
      %406 = vmatprep.subr.mxu0 0.0
      %407 = vmatpush1.msra.mxu0 0.0
      %408 = vmatprep.subr.mxu0 0.0
      %409 = vmatpush1.msra.mxu0 0.0
      %410 = vmatprep.subr.mxu0 0.0
      %411 = vmatpush1.msra.mxu0 0.0
      %412 = vmatprep.subr.mxu0 0.0
      %413 = vmatpush1.msra.mxu0 0.0
      %414 = vmatprep.subr.mxu0 0.0
      %415 = vmatpush1.msra.mxu0 0.0
      %416 = vmatprep.subr.mxu0 0.0
      %417 = vmatpush1.msra.mxu0 0.0
      %418 = vmatprep.subr.mxu0 0.0
      %419 = vmatpush1.msra.mxu0 0.0
      %420 = vmatprep.subr.mxu0 0.0
      %421 = vmatpush1.msra.mxu0 %v392
      %422 = vmatprep.subr.mxu0 0.0
      %423 = vmatpush1.msra.mxu0 %v391
      %424 = vmatprep.subr.mxu0 0.0
      %425 = vmatpush1.msra.mxu0 %v390
      %426 = vmatprep.subr.mxu0 0.0
      %427 = vmatpush1.msra.mxu0 %v389
      %428 = vmatprep.subr.mxu0 0.0
      %429 = vmatpush1.msra.mxu0 %v388
      %430 = vmatprep.subr.mxu0 0.0
      %431 = vmatpush1.msra.mxu0 %v387
      %432 = vmatprep.subr.mxu0 0.0
      %433 = vmatpush1.msra.mxu0 %v386
      %434 = vmatprep.subr.mxu0 0.0
      %435 = vmatpush1.msra.mxu0 %v385
      %436 = vmatprep.subr.mxu0 0.0
      %437 = vmatpush2.msra.mxu0 0.0
      %438 = vmatprep.subr.mxu0 0.0
      %439 = vmatpush2.msra.mxu0 0.0
      %440 = vmatprep.subr.mxu0 0.0
      %441 = vmatpush2.msra.mxu0 0.0
      %442 = vmatprep.subr.mxu0 0.0
      %443 = vmatpush2.msra.mxu0 0.0
      %444 = vmatprep.subr.mxu0 0.0
      %445 = vmatpush2.msra.mxu0 0.0
      %446 = vmatprep.subr.mxu0 0.0
      %447 = vmatpush2.msra.mxu0 0.0
      %448 = vmatprep.subr.mxu0 0.0
      %449 = vmatpush2.msra.mxu0 0.0
      %450 = vmatprep.subr.mxu0 0.0
      %451 = vmatpush2.msra.mxu0 0.0
      %452 = vmatprep.subr.mxu0 0.0
      %453 = vmatpush2.msra.mxu0 0.0
      %454 = vmatprep.subr.mxu0 0.0
      %455 = vmatpush2.msra.mxu0 0.0
      %456 = vmatprep.subr.mxu0 0.0
      %457 = vmatpush2.msra.mxu0 0.0
      %458 = vmatprep.subr.mxu0 0.0
      %459 = vmatpush2.msra.mxu0 0.0
      %460 = vmatprep.subr.mxu0 0.0
      %461 = vmatpush2.msra.mxu0 0.0
      %462 = vmatprep.subr.mxu0 0.0
      %463 = vmatpush2.msra.mxu0 0.0
      %464 = vmatprep.subr.mxu0 0.0
      %465 = vmatpush2.msra.mxu0 0.0
      %466 = vmatprep.subr.mxu0 0.0
      %467 = vmatpush2.msra.mxu0 0.0
      %468 = vmatprep.mubr.f32.mxu0 0.0
      %469 = vmatmul.mubr.f32.gmra.mxu0 %v399
      %v470 = vpop.f32.mrf.mxu0
      %v471 = vadd.f32 %v397, %v470
      %v472 = vpop.f32.mrf.mxu0
      %473 = vmatprep.mubr.f32.mxu0 0.0
      %474 = vmatmul.mubr.f32.gmra.mxu0 %v402
      %v475 = vpop.f32.mrf.mxu0
      %v476 = vadd.f32 %v397, %v475
      %v477 = vpop.f32.mrf.mxu0
      %478 = vdwg.mxu0
      %v479 = vtanh.pop %v471
      %v480 = vtanh.pop %v476
      %v481 = vld [vmem:[%s3 + $0x6] sm:$0x1]
      %v482 = vld [vmem:[%s3 + $0x7] sm:$0x1]
      %v483 = vsel %vm345, %v479, 0.0
      %484 = vadd.xlane.f32.xlu0 %v483
      %v485 = vpop.xlane.xlu0 %484
      %v486 = vsel %vm345, %v480, 0.0
      %487 = vadd.xlane.f32.xlu0 %v486
      %v488 = vpop.xlane.xlu0 %487
      %v489 = vmul.f32 %v485, %v352
      %v490 = vmul.f32 %v488, %v352
      %v491 = vsub.f32 %v479, %v489
      %v492 = vsub.f32 %v480, %v490
      %v493 = vmul.f32 %v491, %v491
      %v494 = vmul.f32 %v492, %v492
      %v495 = vsel %vm345, %v493, 0.0
      %496 = vadd.xlane.f32.xlu0 %v495
      %v497 = vpop.xlane.xlu0 %496
      %v498 = vsel %vm345, %v494, 0.0
      %499 = vadd.xlane.f32.xlu0 %v498
      %v500 = vpop.xlane.xlu0 %499
      %v501 = vmul.f32 %v497, %v352
      %v502 = vmul.f32 %v500, %v352
      %v503 = vadd.f32 %v501, 1e-05
      %v504 = vadd.f32 %v502, 1e-05
      %v505 = vrsqrt.pop %v503
      %v506 = vrsqrt.pop %v504
      %v507 = vmul.f32 %v491, %v505
      %v508 = vmul.f32 %v492, %v506
      %v509 = vlaneseq
      %v510 = vshrl.u32 %v509, 7
      %v511 = vsub.s32 0, %v510
      %v512 = vrot.slane %v481, %v511
      %v513 = vmul.f32 %v507, %v512
      %v514 = vmul.f32 %v508, %v512
      %v515 = vlaneseq
      %v516 = vshrl.u32 %v515, 7
      %v517 = vsub.s32 0, %v516
      %v518 = vrot.slane %v482, %v517
      %v519 = vadd.f32 %v513, %v518
      %v520 = vadd.f32 %v514, %v518
      %v521 = vld [vmem:[#allocation2] sm:$0xff]
      %v522 = vld [vmem:[#allocation2 + $0x8] sm:$0xff]
      %524 = vset.pattern.permute.xlu0 127
      %525 = vperm.xlu0 %524, %v207
      %v526 = vpop.permute.xlu0 %525
      %529 = vset.pattern.permute.xlu0 127
      %530 = vperm.xlu0 %529, %v208
      %v531 = vpop.permute.xlu0 %530
      %v533 = vmul.f32 %v521, %v526
      %v534 = vmul.f32 %v522, %v531
      %537 = vrot.lane.b32.xlu0 %v533, 64
      %v538 = vpop.permute.xlu0 %537
      %539 = vrot.lane.b32.xlu0 %v534, 64
      %v540 = vpop.permute.xlu0 %539
      %v543 = vsel %vm345, %v519, %v538
      %v544 = vsel %vm345, %v520, %v540
      %v545 = vld [vmem:[%s2 + $0x10] sm:$0xff]
      %v546 = vld [vmem:[%s2 + $0x18] sm:$0xff]
      %v547 = vld [vmem:[%s2 + $0x38] sm:$0xff]
      %v548 = vld [vmem:[%s2 + $0x40] sm:$0xff]
      %v549 = vld [vmem:[%s2 + $0x60] sm:$0xff]
      %v550 = vld [vmem:[%s2 + $0x68] sm:$0xff]
      %v551 = vld [vmem:[%s2 + $0x88] sm:$0xff]
      %v552 = vld [vmem:[%s2 + $0x90] sm:$0xff]
      %v553 = vld [vmem:[%s2 + $0xb0] sm:$0xff]
      %v554 = vld [vmem:[%s2 + $0xb8] sm:$0xff]
      %v555 = vld [vmem:[%s2 + $0xd8] sm:$0xff]
      %v556 = vld [vmem:[%s2 + $0xe0] sm:$0xff]
      %v557 = vld [vmem:[%s2 + $0x100] sm:$0xff]
      %v558 = vld [vmem:[%s2 + $0x108] sm:$0xff]
      %v559 = vld [vmem:[%s2 + $0x128] sm:$0xff]
      %v560 = vld [vmem:[%s2 + $0x130] sm:$0xff]
      %v561 = vld [vmem:[%s2 + $0x150] sm:$0xff]
      %v562 = vld [vmem:[%s2 + $0x158] sm:$0xff]
      %v563 = vld [vmem:[%s2 + $0x178] sm:$0xff]
      %v564 = vld [vmem:[%s2 + $0x180] sm:$0xff]
      %v565 = vld [vmem:[%s2 + $0x1a0] sm:$0xff]
      %v566 = vld [vmem:[%s2 + $0x1a8] sm:$0xff]
      %v567 = vld [vmem:[%s2 + $0x1c8] sm:$0xff]
      %v568 = vld [vmem:[%s2 + $0x1d0] sm:$0xff]
      %v569 = vld [vmem:[%s2 + $0x1f0] sm:$0xff]
      %v570 = vld [vmem:[%s2 + $0x1f8] sm:$0xff]
      %v571 = vld [vmem:[%s2 + $0x218] sm:$0xff]
      %v572 = vld [vmem:[%s2 + $0x220] sm:$0xff]
      %v573 = vld [vmem:[%s2 + $0x240] sm:$0xff]
      %v574 = vld [vmem:[%s2 + $0x248] sm:$0xff]
      %v575 = vld [vmem:[%s2 + $0x268] sm:$0xff]
      %v576 = vld [vmem:[%s2 + $0x270] sm:$0xff]
      %577 = vmatprep.subr.mxu0 %v576
      %578 = vmatpush1.msra.mxu0 %v575
      %579 = vmatprep.subr.mxu0 %v574
      %580 = vmatpush1.msra.mxu0 %v573
      %581 = vmatprep.subr.mxu0 %v572
      %582 = vmatpush1.msra.mxu0 %v571
      %583 = vmatprep.subr.mxu0 %v570
      %584 = vmatpush1.msra.mxu0 %v569
      %585 = vmatprep.subr.mxu0 %v568
      %586 = vmatpush1.msra.mxu0 %v567
      %587 = vmatprep.subr.mxu0 %v566
      %588 = vmatpush1.msra.mxu0 %v565
      %589 = vmatprep.subr.mxu0 %v564
      %590 = vmatpush1.msra.mxu0 %v563
      %591 = vmatprep.subr.mxu0 %v562
      %592 = vmatpush1.msra.mxu0 %v561
      %593 = vmatprep.subr.mxu0 %v560
      %594 = vmatpush1.msra.mxu0 %v559
      %595 = vmatprep.subr.mxu0 %v558
      %596 = vmatpush1.msra.mxu0 %v557
      %597 = vmatprep.subr.mxu0 %v556
      %598 = vmatpush1.msra.mxu0 %v555
      %599 = vmatprep.subr.mxu0 %v554
      %600 = vmatpush1.msra.mxu0 %v553
      %601 = vmatprep.subr.mxu0 %v552
      %602 = vmatpush1.msra.mxu0 %v551
      %603 = vmatprep.subr.mxu0 %v550
      %604 = vmatpush1.msra.mxu0 %v549
      %605 = vmatprep.subr.mxu0 %v548
      %606 = vmatpush1.msra.mxu0 %v547
      %607 = vmatprep.subr.mxu0 %v546
      %608 = vmatpush1.msra.mxu0 %v545
      %609 = vmatprep.subr.mxu0 0.0
      %610 = vmatpush2.msra.mxu0 0.0
      %611 = vmatprep.subr.mxu0 0.0
      %612 = vmatpush2.msra.mxu0 0.0
      %613 = vmatprep.subr.mxu0 0.0
      %614 = vmatpush2.msra.mxu0 0.0
      %615 = vmatprep.subr.mxu0 0.0
      %616 = vmatpush2.msra.mxu0 0.0
      %617 = vmatprep.subr.mxu0 0.0
      %618 = vmatpush2.msra.mxu0 0.0
      %619 = vmatprep.subr.mxu0 0.0
      %620 = vmatpush2.msra.mxu0 0.0
      %621 = vmatprep.subr.mxu0 0.0
      %622 = vmatpush2.msra.mxu0 0.0
      %623 = vmatprep.subr.mxu0 0.0
      %624 = vmatpush2.msra.mxu0 0.0
      %625 = vmatprep.subr.mxu0 0.0
      %626 = vmatpush2.msra.mxu0 0.0
      %627 = vmatprep.subr.mxu0 0.0
      %628 = vmatpush2.msra.mxu0 0.0
      %629 = vmatprep.subr.mxu0 0.0
      %630 = vmatpush2.msra.mxu0 0.0
      %631 = vmatprep.subr.mxu0 0.0
      %632 = vmatpush2.msra.mxu0 0.0
      %633 = vmatprep.subr.mxu0 0.0
      %634 = vmatpush2.msra.mxu0 0.0
      %635 = vmatprep.subr.mxu0 0.0
      %636 = vmatpush2.msra.mxu0 0.0
      %637 = vmatprep.subr.mxu0 0.0
      %638 = vmatpush2.msra.mxu0 0.0
      %639 = vmatprep.subr.mxu0 0.0
      %640 = vmatpush2.msra.mxu0 0.0
      %641 = vmatprep.mubr.f32.mxu0 0.0
      %642 = vmatmul.mubr.f32.gmra.mxu0 %v543
      %v643 = vpop.f32.mrf.mxu0
      %v644 = vadd.f32 0.0, %v643
      %v645 = vpop.f32.mrf.mxu0
      %v646 = vadd.f32 0.0, %v645
      %647 = vmatprep.mubr.f32.mxu0 0.0
      %648 = vmatmul.mubr.f32.gmra.mxu0 %v544
      %v649 = vpop.f32.mrf.mxu0
      %v650 = vadd.f32 0.0, %v649
      %v651 = vpop.f32.mrf.mxu0
      %v652 = vadd.f32 0.0, %v651
      %653 = vdwg.mxu0
      %v654 = vld [vmem:[%s3 + $0x8] sm:$0x1]
      %v655 = vlaneseq
      %v656 = vshrl.u32 %v655, 7
      %v657 = vsub.s32 0, %v656
      %v658 = vrot.slane %v654, %v657
      %v659 = vadd.f32 %v644, %v658
      %v660 = vadd.f32 %v650, %v658
      %v661 = vxor.u32 %v659, 2147483648
      %v662 = vxor.u32 %v660, 2147483648
      %v663 = vmul.f32 %v661, 1.442695
      %v664 = vpow.pop %v663
      %v665 = vmul.f32 %v662, 1.442695
      %v666 = vpow.pop %v665
      %v667 = vadd.f32 %v664, 1.0
      %v668 = vadd.f32 %v666, 1.0
      %v669 = vrcp.pop %v667
      %v670 = vmul.f32 1.0, %v669
      %v671 = vrcp.pop %v668
      %v672 = vmul.f32 1.0, %v671
      %v673 = vld [vmem:[%s3 + $0x9] sm:$0x1]
      %v674 = vlaneseq
      %v675 = vshrl.u32 %v674, 7
      %v676 = vsub.s32 0, %v675
      %v677 = vrot.slane %v673, %v676
      %v678 = vadd.f32 %v646, %v677
      %v679 = vadd.f32 %v652, %v677
      %v680 = vld [vmem:[%s3 + $0xa] sm:$0x1]
      %v681 = vlaneseq
      %v682 = vshrl.u32 %v681, 7
      %v683 = vsub.s32 0, %v682
      %v684 = vrot.slane %v680, %v683
      %686 = vrot.lane.b32.xlu0 %v684, 64
      %v687 = vpop.permute.xlu0 %686
      %v689 = vadd.f32 %v646, %v687
      %v690 = vadd.f32 %v652, %v687
      %693 = vrot.lane.b32.xlu0 %v689, 64
      %v694 = vpop.permute.xlu0 %693
      %695 = vrot.lane.b32.xlu0 %v690, 64
      %v696 = vpop.permute.xlu0 %695
      %v699 = vmul.f32 %v670, %v694
      %v700 = vmul.f32 %v672, %v696
      %v701 = vadd.f32 %v678, %v699
      %v702 = vadd.f32 %v679, %v700
      %v703 = vtanh.pop %v701
      %v704 = vtanh.pop %v702
      %v705 = vsub.f32 1.0, %v670
      %v706 = vsub.f32 1.0, %v672
      %709 = vrot.lane.b32.xlu0 %v703, 64
      %v710 = vpop.permute.xlu0 %709
      %711 = vrot.lane.b32.xlu0 %v704, 64
      %v712 = vpop.permute.xlu0 %711
      %v715 = vmul.f32 %v705, %v710
      %v716 = vmul.f32 %v706, %v712
      %v717 = vmul.f32 %v670, %v538
      %v718 = vmul.f32 %v672, %v540
      %v719 = vadd.f32 %v715, %v717
      %v720 = vadd.f32 %v716, %v718
      %723 = vrot.lane.b32.xlu0 %v719, 64
      %v724 = vpop.permute.xlu0 %723
      %725 = vrot.lane.b32.xlu0 %v720, 64
      %v726 = vpop.permute.xlu0 %725
      %729 = vst.msk [vmem:[#allocation2] sm:$0xff] %vm345, %v724
      %730 = vst.msk [vmem:[#allocation2 + $0x8] sm:$0xff] %vm345, %v726
      %v731 = vld [vmem:[%s3 + $0xb] sm:$0x1]
      %v732 = vld [vmem:[%s3 + $0xc] sm:$0x1]
      %v733 = vsel %vm345, %v724, 0.0
      %734 = vadd.xlane.f32.xlu0 %v733
      %v735 = vpop.xlane.xlu0 %734
      %v736 = vsel %vm345, %v726, 0.0
      %737 = vadd.xlane.f32.xlu0 %v736
      %v738 = vpop.xlane.xlu0 %737
      %v739 = vmul.f32 %v735, %v352
      %v740 = vmul.f32 %v738, %v352
      %v741 = vsub.f32 %v719, %v739
      %v742 = vsub.f32 %v720, %v740
      %v743 = vmul.f32 %v741, %v741
      %v744 = vmul.f32 %v742, %v742
      %747 = vrot.lane.b32.xlu0 %v743, 64
      %v748 = vpop.permute.xlu0 %747
      %749 = vrot.lane.b32.xlu0 %v744, 64
      %v750 = vpop.permute.xlu0 %749
      %v753 = vsel %vm345, %v748, 0.0
      %754 = vadd.xlane.f32.xlu0 %v753
      %v755 = vpop.xlane.xlu0 %754
      %v756 = vsel %vm345, %v750, 0.0
      %757 = vadd.xlane.f32.xlu0 %v756
      %v758 = vpop.xlane.xlu0 %757
      %v759 = vmul.f32 %v755, %v352
      %v760 = vmul.f32 %v758, %v352
      %v761 = vadd.f32 %v759, 1e-05
      %v762 = vadd.f32 %v760, 1e-05
      %v763 = vrsqrt.pop %v761
      %v764 = vrsqrt.pop %v762
      %v765 = vmul.f32 %v741, %v763
      %v766 = vmul.f32 %v742, %v764
      %v767 = vlaneseq
      %v768 = vshrl.u32 %v767, 7
      %v769 = vsub.s32 0, %v768
      %v770 = vrot.slane %v731, %v769
      %772 = vrot.lane.b32.xlu0 %v770, 64
      %v773 = vpop.permute.xlu0 %772
      %v775 = vmul.f32 %v765, %v773
      %v776 = vmul.f32 %v766, %v773
      %v777 = vlaneseq
      %v778 = vshrl.u32 %v777, 7
      %v779 = vsub.s32 0, %v778
      %v780 = vrot.slane %v732, %v779
      %782 = vrot.lane.b32.xlu0 %v780, 64
      %v783 = vpop.permute.xlu0 %782
      %v785 = vadd.f32 %v775, %v783
      %v786 = vadd.f32 %v776, %v783
      %789 = vrot.lane.b32.xlu0 %v785, 64
      %v790 = vpop.permute.xlu0 %789
      %791 = vrot.lane.b32.xlu0 %v786, 64
      %v792 = vpop.permute.xlu0 %791
      %795 = vrot.lane.b32.xlu0 %v207, 32
      %v796 = vpop.permute.xlu0 %795
      %797 = vrot.lane.b32.xlu0 %v208, 32
      %v798 = vpop.permute.xlu0 %797
      %v801 = vsel %vm345, %v790, %v796
      %v802 = vsel %vm345, %v792, %v798
      %v803 = vld [vmem:[%s2 + $0x20] sm:$0xff]
      %v804 = vld [vmem:[%s2 + $0x48] sm:$0xff]
      %v805 = vld [vmem:[%s2 + $0x70] sm:$0xff]
      %v806 = vld [vmem:[%s2 + $0x98] sm:$0xff]
      %v807 = vld [vmem:[%s2 + $0xc0] sm:$0xff]
      %v808 = vld [vmem:[%s2 + $0xe8] sm:$0xff]
      %v809 = vld [vmem:[%s2 + $0x110] sm:$0xff]
      %v810 = vld [vmem:[%s2 + $0x138] sm:$0xff]
      %v811 = vld [vmem:[%s2 + $0x160] sm:$0xff]
      %v812 = vld [vmem:[%s2 + $0x188] sm:$0xff]
      %v813 = vld [vmem:[%s2 + $0x1b0] sm:$0xff]
      %v814 = vld [vmem:[%s2 + $0x1d8] sm:$0xff]
      %v815 = vld [vmem:[%s2 + $0x200] sm:$0xff]
      %v816 = vld [vmem:[%s2 + $0x228] sm:$0xff]
      %v817 = vld [vmem:[%s2 + $0x250] sm:$0xff]
      %v818 = vld [vmem:[%s2 + $0x278] sm:$0xff]
      %819 = vmatprep.subr.mxu0 0.0
      %820 = vmatpush1.msra.mxu0 %v818
      %821 = vmatprep.subr.mxu0 0.0
      %822 = vmatpush1.msra.mxu0 %v817
      %823 = vmatprep.subr.mxu0 0.0
      %824 = vmatpush1.msra.mxu0 %v816
      %825 = vmatprep.subr.mxu0 0.0
      %826 = vmatpush1.msra.mxu0 %v815
      %827 = vmatprep.subr.mxu0 0.0
      %828 = vmatpush1.msra.mxu0 %v814
      %829 = vmatprep.subr.mxu0 0.0
      %830 = vmatpush1.msra.mxu0 %v813
      %831 = vmatprep.subr.mxu0 0.0
      %832 = vmatpush1.msra.mxu0 %v812
      %833 = vmatprep.subr.mxu0 0.0
      %834 = vmatpush1.msra.mxu0 %v811
      %835 = vmatprep.subr.mxu0 0.0
      %836 = vmatpush1.msra.mxu0 %v810
      %837 = vmatprep.subr.mxu0 0.0
      %838 = vmatpush1.msra.mxu0 %v809
      %839 = vmatprep.subr.mxu0 0.0
      %840 = vmatpush1.msra.mxu0 %v808
      %841 = vmatprep.subr.mxu0 0.0
      %842 = vmatpush1.msra.mxu0 %v807
      %843 = vmatprep.subr.mxu0 0.0
      %844 = vmatpush1.msra.mxu0 %v806
      %845 = vmatprep.subr.mxu0 0.0
      %846 = vmatpush1.msra.mxu0 %v805
      %847 = vmatprep.subr.mxu0 0.0
      %848 = vmatpush1.msra.mxu0 %v804
      %849 = vmatprep.subr.mxu0 0.0
      %850 = vmatpush1.msra.mxu0 %v803
      %851 = vmatprep.subr.mxu0 0.0
      %852 = vmatpush2.msra.mxu0 0.0
      %853 = vmatprep.subr.mxu0 0.0
      %854 = vmatpush2.msra.mxu0 0.0
      %855 = vmatprep.subr.mxu0 0.0
      %856 = vmatpush2.msra.mxu0 0.0
      %857 = vmatprep.subr.mxu0 0.0
      %858 = vmatpush2.msra.mxu0 0.0
      %859 = vmatprep.subr.mxu0 0.0
      %860 = vmatpush2.msra.mxu0 0.0
      %861 = vmatprep.subr.mxu0 0.0
      %862 = vmatpush2.msra.mxu0 0.0
      %863 = vmatprep.subr.mxu0 0.0
      %864 = vmatpush2.msra.mxu0 0.0
      %865 = vmatprep.subr.mxu0 0.0
      %866 = vmatpush2.msra.mxu0 0.0
      %867 = vmatprep.subr.mxu0 0.0
      %868 = vmatpush2.msra.mxu0 0.0
      %869 = vmatprep.subr.mxu0 0.0
      %870 = vmatpush2.msra.mxu0 0.0
      %871 = vmatprep.subr.mxu0 0.0
      %872 = vmatpush2.msra.mxu0 0.0
      %873 = vmatprep.subr.mxu0 0.0
      %874 = vmatpush2.msra.mxu0 0.0
      %875 = vmatprep.subr.mxu0 0.0
      %876 = vmatpush2.msra.mxu0 0.0
      %877 = vmatprep.subr.mxu0 0.0
      %878 = vmatpush2.msra.mxu0 0.0
      %879 = vmatprep.subr.mxu0 0.0
      %880 = vmatpush2.msra.mxu0 0.0
      %881 = vmatprep.subr.mxu0 0.0
      %882 = vmatpush2.msra.mxu0 0.0
      %883 = vmatprep.mubr.f32.mxu0 0.0
      %884 = vmatmul.mubr.f32.gmra.mxu0 %v801
      %v885 = vpop.f32.mrf.mxu0
      %v886 = vadd.f32 0.0, %v885
      %v887 = vpop.f32.mrf.mxu0
      %888 = vmatprep.mubr.f32.mxu0 0.0
      %889 = vmatmul.mubr.f32.gmra.mxu0 %v802
      %v890 = vpop.f32.mrf.mxu0
      %v891 = vadd.f32 0.0, %v890
      %v892 = vpop.f32.mrf.mxu0
      %893 = vdwg.mxu0
      %894 = vmax.xlane.f32.xlu0 %v886
      %v895 = vpop.xlane.xlu0 %894
      %896 = vmax.xlane.f32.xlu0 %v891
      %v897 = vpop.xlane.xlu0 %896
      %v898 = vsub.f32 %v886, %v895
      %v899 = vsub.f32 %v891, %v897
      %v900 = vmul.f32 %v898, 1.442695
      %v901 = vpow.pop %v900
      %v902 = vmul.f32 %v899, 1.442695
      %v903 = vpow.pop %v902
      %904 = vadd.xlane.f32.xlu0 %v901
      %v905 = vpop.xlane.xlu0 %904
      %906 = vadd.xlane.f32.xlu0 %v903
      %v907 = vpop.xlane.xlu0 %906
      %v908 = vlog2.pop %v905
      %v909 = vmul.f32 %v908, 0.6931472
      %v910 = vlog2.pop %v907
      %v911 = vmul.f32 %v910, 0.6931472
      %v912 = vsub.f32 0.0, %v909
      %v913 = vsub.f32 0.0, %v911
      %v914 = vlaneseq
      %v915 = vand.u32 %v914, 127
      %vm916 = vcmp.eq.f32.partialorder %v886, %v895
      %vm917 = vcmp.eq.f32.partialorder %v891, %v897
      %v918 = vsel %vm916, %v915, 128
      %v919 = vsel %vm917, %v915, 128
      %v920 = vand.u32 %v918, 65535
      %v921 = vshra.s32 %v918, 16
      %v922 = vcvt.s32.f32 %v920
      %v923 = vcvt.s32.f32 %v921
      %924 = vmin.xlane.f32.xlu0 %v923
      %v925 = vpop.xlane.xlu0 %924
      %vm926 = vcmp.eq.f32.partialorder %v923, %v925
      %v927 = vsel %vm926, %v922, inf
      %928 = vmin.xlane.f32.xlu0 %v927
      %v929 = vpop.xlane.xlu0 %928
      %v930 = vcvt.f32.s32 %v929
      %v931 = vcvt.f32.s32 %v925
      %v932 = vshll.u32 %v931, 16
      %v933 = vadd.s32 %v932, %v930
      %v934 = vand.u32 %v919, 65535
      %v935 = vshra.s32 %v919, 16
      %v936 = vcvt.s32.f32 %v934
      %v937 = vcvt.s32.f32 %v935
      %938 = vmin.xlane.f32.xlu0 %v937
      %v939 = vpop.xlane.xlu0 %938
      %vm940 = vcmp.eq.f32.partialorder %v937, %v939
      %v941 = vsel %vm940, %v936, inf
      %942 = vmin.xlane.f32.xlu0 %v941
      %v943 = vpop.xlane.xlu0 %942
      %v944 = vcvt.f32.s32 %v943
      %v945 = vcvt.f32.s32 %v939
      %v946 = vshll.u32 %v945, 16
      %v947 = vadd.s32 %v946, %v944
      %v948 = vcvt.s32.f32 %v933
      %v949 = vcvt.s32.f32 %v947
      %vm950 = vcmp.eq.s32.totalorder %v915, 0
      %vm951 = vcmp.eq.s32.totalorder %v915, 1
      %v952 = vsel %vm951, %v912, 0.0
      %v953 = vsel %vm951, %v913, 0.0
      %v954 = vsel %vm950, %v948, %v952
      %v955 = vsel %vm950, %v949, %v953
      %958 = vrot.lane.b32.xlu0 %v954, 64
      %v959 = vpop.permute.xlu0 %958
      %960 = vrot.lane.b32.xlu0 %v955, 64
      %v961 = vpop.permute.xlu0 %960
      %v964 = vsel %vm345, %v724, %v959
      %v965 = vsel %vm345, %v726, %v961
      %966 = vst [vmem:[%s197] sm:$0xff] %v964
      %967 = vst [vmem:[%s197 + $0x8] sm:$0xff] %v965
      %p968 = scmp.lt.s32.totalorder %s15, 7
      %s969 = scalar_select %p968, %s15, 7
      %s970 = smul.addr %s969, 2
      %s971 = smul.addr %s970, 8
      %s972 = scalar_lea.vmem %s4, %s971
      // Predicated region
      $region41: #{r_actor_forward.1} parent=35 // pred_check
        %p973 = pneg %p122
      $region42: #{r_actor_forward.1} parent=35 // pred_check_branch
        %975 = sbr.rel (%p973) target = $region44
      $region43: #{r_actor_forward.1} parent=35 // pred_region
        _
      $region44: #{r_actor_forward.1} parent=35 // pred_fallthru
        _
    $region36: #{r_actor_forward.1} parent=5 // pred_fallthru
      _
    %p976 = scmp.le.s32.totalorder 2, %s10
    // Predicated region
    $region45: #{r_actor_forward.1} parent=5 // pred_check
      %p977 = pneg %p976
    $region46: #{r_actor_forward.1} parent=5 // pred_check_branch
      %979 = sbr.rel (%p977) target = $region48
    $region47: #{r_actor_forward.1} parent=5 // pred_region
      %s980 = ssub.s32 %s10, 2
      // Predicated region
      $region49: #{r_actor_forward.1} parent=47 // pred_check
        %p981 = pneg %p128
      $region50: #{r_actor_forward.1} parent=47 // pred_check_branch
        %983 = sbr.rel (%p981) target = $region52
      $region51: #{r_actor_forward.1} parent=47 // pred_region
        %p984 = scmp.lt.s32.totalorder %s16, 7
        %s985 = scalar_select %p984, %s16, 7
        %s986 = smul.addr %s985, 2
        %s987 = smul.addr %s986, 8
        %s988 = scalar_lea.vmem %s4, %s987
      $region52: #{r_actor_forward.1} parent=47 // pred_fallthru
        _
    $region48: #{r_actor_forward.1} parent=5 // pred_fallthru
      _
  $region6: #{r_actor_forward.1} parent=0 // loop_footer
    %s14 = sadd.s32 1, %s10
  $region7: #{r_actor_forward.1} parent=0 // loop_footer_branch
    %9 = sbr.rel target = $region3
  $region8: #{r_actor_forward.1} parent=0 // loop_exit
    _

</llo_original>
